<compile_context>
chip_gen: v7x
topology: tpu7x:2x2x1
jax: 0.10.0
libtpu: 0.0.40
codegen_flags: <defaults>
</compile_context>

<pallas_src>
import functools

import jax
import jax.numpy as jnp
from jax.experimental import pallas as pl
from jax.experimental.pallas import tpu as pltpu

EPS = 1e-5       # PyTorch LayerNorm / TransformerEncoderLayer default
NEG_INF = -1e30  # additive mask for padded key rows


def _layernorm(x, g, b, eps):
    mu = jnp.mean(x, axis=-1, keepdims=True)
    var = jnp.mean((x - mu) ** 2, axis=-1, keepdims=True)
    return (x - mu) * jax.lax.rsqrt(var + eps) * g + b


def _fused_kernel(x_ref, wqkv_ref, wo_ref, w1_ref, w2_ref, vecs_ref, fin_ref,
                  o_ref, *, nhead, n_layers, s_real, eps):
    """One grid step = (one batch block, one transformer encoder layer)."""
    l = pl.program_id(1)

    # o_ref's block index depends only on the batch block, so it stays resident
    # in VMEM across all layer steps -> use it as the activation accumulator.
    @pl.when(l == 0)
    def _():
        o_ref[...] = x_ref[...]

    x3 = o_ref[...]                          # (Bb, Sp, C) float32
    Bb, Sp, C = x3.shape
    R = Bb * Sp
    FF = w1_ref.shape[2]
    dh = C // nhead

    x2 = x3.reshape(R, C)                    # Sp % 8 == 0 -> layout no-op

    wqkv = wqkv_ref[0]                       # (C, 3C)  bf16 fused q|k|v weights
    wo = wo_ref[0]                           # (C, C)   bf16
    w1 = w1_ref[0]                           # (C, FF)  bf16
    w2 = w2_ref[0]                           # (FF, C)  bf16
    vecs = vecs_ref[0]                       # (8, P)   f32 packed bias / LN vectors
    bqkv = vecs[0:1, :3 * C]
    bo = vecs[1:2, :C]
    b1 = vecs[2:3, :FF]
    b2 = vecs[3:4, :C]
    g1, be1 = vecs[4:5, :C], vecs[5:6, :C]
    g2, be2 = vecs[6:7, :C], vecs[7:8, :C]

    # ---- multi-head self-attention (per-batch scores, bf16 MXU operands) ----
    qkv = jnp.dot(x2.astype(jnp.bfloat16), wqkv,
                  preferred_element_type=jnp.float32) + bqkv        # (R, 3C) f32
    qkv3 = qkv.reshape(Bb, Sp, 3 * C)

    # Padded key rows (index >= s_real) masked in-kernel; no HBM bias tensor.
    if Sp != s_real:
        col = jax.lax.broadcasted_iota(jnp.int32, (1, 1, Sp), 2)
        kmask = jnp.where(col < s_real, 0.0, NEG_INF).astype(jnp.float32)

    heads = []
    for h in range(nhead):                   # static unroll (nhead is small)
        lo = h * dh
        # 1/sqrt(dh) is folded into the Q weights/bias at parameter-build time.
        qh = qkv3[:, :, lo:lo + dh].astype(jnp.bfloat16)            # (Bb,Sp,dh)
        kh = qkv3[:, :, C + lo:C + lo + dh].astype(jnp.bfloat16)
        vh = qkv3[:, :, 2 * C + lo:2 * C + lo + dh].astype(jnp.bfloat16)
        s = jnp.einsum('bqd,bkd->bqk', qh, kh,
                       preferred_element_type=jnp.float32)          # (Bb,Sp,Sp)
        if Sp != s_real:
            s = s + kmask
        m = jnp.max(s, axis=-1, keepdims=True)
        e = jnp.exp(s - m)
        p = e * pl.reciprocal(jnp.sum(e, axis=-1, keepdims=True), approx=False)
        heads.append(jnp.einsum('bqk,bkd->bqd', p.astype(jnp.bfloat16), vh,
                                preferred_element_type=jnp.float32))
    # Head-concat context -> ONE full-depth output-projection matmul.
    ctx = jnp.concatenate(heads, axis=-1).reshape(R, C)
    attn = jnp.dot(ctx.astype(jnp.bfloat16), wo,
                   preferred_element_type=jnp.float32) + bo

    # ---- post-norm residual blocks (dropout == identity in eval mode) -------
    h1 = _layernorm(x2 + attn, g1, be1, eps)

    ff = jnp.dot(h1.astype(jnp.bfloat16), w1,
                 preferred_element_type=jnp.float32) + b1
    ff = jnp.maximum(ff, 0.0)                                        # ReLU
    ff = jnp.dot(ff.astype(jnp.bfloat16), w2,
                 preferred_element_type=jnp.float32) + b2
    h2 = _layernorm(h1 + ff, g2, be2, eps)

    o_ref[...] = h2.reshape(Bb, Sp, C)       # stays resident for the next layer

    # Final encoder LayerNorm fused into the last layer step (one writeback).
    @pl.when(l == n_layers - 1)
    def _():
        o_ref[...] = _layernorm(h2, fin_ref[0:1, :], fin_ref[1:2, :],
                                eps).reshape(Bb, Sp, C)


def ft_transformer_convs(x, params, nhead):
    """x: [B, num_cols, C] -> (x_out [B, num_cols, C], x_cls [B, C])"""
    B, N, C = x.shape
    S = N + 1                                # CLS token + columns
    Sp = ((S + 7) // 8) * 8                  # sublane-aligned sequence length
    L = params["wqkv"].shape[0]
    FF = params["w1"].shape[2]
    P = params["vecs"].shape[2]

    assert C % nhead == 0, "channels must be divisible by nhead"
    assert P >= max(3 * C, FF, C), "packed vector width too small"

    cls = jnp.broadcast_to(params["cls"].reshape(1, 1, C), (B, 1, C))
    xc = jnp.concatenate([cls, x.astype(jnp.float32)], axis=1)       # (B, S, C)
    if Sp != S:
        xc = jnp.pad(xc, ((0, 0), (0, Sp - S), (0, 0)))              # zero rows

    # Two "parallel" batch blocks whenever possible (both v7x TensorCores busy);
    # weights are only re-streamed nb (=2) times, negligible HBM traffic.
    nb = 2 if (B % 2 == 0 and B >= 2) else 1
    Bb = B // nb

    act_map = lambda bb, l: (bb, 0, 0)       # changes only with the batch block
    layer_map = lambda bb, l: (l, 0, 0)      # one layer's weights per grid step
    fin_map = lambda bb, l: (0, 0)           # fetched once

    # Advisory cost estimate so XLA schedules surrounding ops sensibly.
    Rt = B * Sp
    flops = L * (2 * Rt * C * 3 * C + 4 * B * Sp * Sp * C
                 + 2 * Rt * C * C + 4 * Rt * C * FF)
    transc = L * B * nhead * Sp * Sp
    w_bytes = (3 * C * C + C * C + 2 * C * FF) * 2 + 8 * P * 4
    cost = pl.CostEstimate(flops=int(flops), transcendentals=int(transc),
                           bytes_accessed=int(2 * Rt * C * 4 + nb * L * w_bytes))

    # Explicit VMEM budget (v7x physical VMEM is 64 MiB): resident out block +
    # double-buffered activations + double-buffered per-layer weights + temps.
    Rb = Bb * Sp
    est = (3 * Rb * C * 4 + 2 * w_bytes
           + (Rb * 3 * C + 3 * Bb * Sp * Sp + Rb * (C + FF)) * 4)
    vmem_limit = int(min(60 * 2 ** 20, max(32 * 2 ** 20, 2 * est)))

    out = pl.pallas_call(
        functools.partial(_fused_kernel, nhead=nhead, n_layers=L, s_real=S,
                          eps=EPS),
        out_shape=jax.ShapeDtypeStruct((B, Sp, C), jnp.float32),
        grid=(nb, L),
        in_specs=[
            pl.BlockSpec((Bb, Sp, C), act_map),      # activations (3D, padded S)
            pl.BlockSpec((1, C, 3 * C), layer_map),  # fused QKV weight (bf16)
            pl.BlockSpec((1, C, C), layer_map),      # attention out-proj (bf16)
            pl.BlockSpec((1, C, FF), layer_map),     # FFN W1 (bf16)
            pl.BlockSpec((1, FF, C), layer_map),     # FFN W2 (bf16)
            pl.BlockSpec((1, 8, P), layer_map),      # packed biases / LN vectors
            pl.BlockSpec((2, C), fin_map),           # final LayerNorm gamma/beta
        ],
        out_specs=pl.BlockSpec((Bb, Sp, C), act_map),
        compiler_params=pltpu.CompilerParams(
            dimension_semantics=("parallel", "arbitrary"),
            vmem_limit_bytes=vmem_limit),
        cost_estimate=cost,
    )(xc, params["wqkv"], params["wo"], params["w1"], params["w2"],
      params["vecs"], params["fin"])

    return out[:, 1:S, :], out[:, 0, :]


# --------------------- deterministic parameter construction ---------------------

def _xavier_uniform(key, fan_in, fan_out, shape):
    a = (6.0 / (fan_in + fan_out)) ** 0.5
    return jax.random.uniform(key, shape, jnp.float32, -a, a)


def make_params(key, channels, num_layers, nhead, feedforward_channels=None):
    C = channels
    FF = feedforward_channels or channels
    dh = C // nhead
    qscale = 1.0 / float(dh) ** 0.5          # folded into Q weights (and bias)
    P = max(3 * C, FF, C)
    keys = jax.random.split(key, num_layers + 1)
    wqkv, wo, w1, w2, vecs = [], [], [], [], []
    for l in range(num_layers):
        ks = jax.random.split(keys[l], 4)
        # weights stored pre-transposed (in, out): y = x @ W + b; bf16 for MXU/DMA.
        wq = _xavier_uniform(ks[0], C, 3 * C, (C, 3 * C))
        wq = wq.at[:, :C].multiply(qscale)   # fold 1/sqrt(dh) attention scale
        wqkv.append(wq.astype(jnp.bfloat16))
        wo.append(_xavier_uniform(ks[1], C, C, (C, C)).astype(jnp.bfloat16))
        w1.append(_xavier_uniform(ks[2], C, FF, (C, FF)).astype(jnp.bfloat16))
        w2.append(_xavier_uniform(ks[3], FF, C, (FF, C)).astype(jnp.bfloat16))
        # packed per-layer f32 vectors (row order):
        #   0: bqkv(3C; q-part must also carry the 1/sqrt(dh) fold — zero here)
        #   1: bo(C)  2: b1(FF)  3: b2(C)
        #   4: ln1 gamma 5: ln1 beta 6: ln2 gamma 7: ln2 beta
        v = jnp.zeros((8, P), jnp.float32)
        v = v.at[4, :C].set(1.0).at[6, :C].set(1.0)
        vecs.append(v)
    cls = 0.01 * jax.random.normal(keys[num_layers], (C,), jnp.float32)
    fin = jnp.stack([jnp.ones((C,), jnp.float32), jnp.zeros((C,), jnp.float32)])
    return dict(
        wqkv=jnp.stack(wqkv), wo=jnp.stack(wo), w1=jnp.stack(w1),
        w2=jnp.stack(w2), vecs=jnp.stack(vecs), cls=cls, fin=fin)


if __name__ == "__main__":
    B, NUM_COLS, CHANNELS = 2, 8, 64
    NUM_LAYERS, NHEAD = 3, 8

    key = jax.random.PRNGKey(0)
    pkey, xkey = jax.random.split(key)
    params = make_params(pkey, CHANNELS, NUM_LAYERS, NHEAD)
    x = jax.random.normal(xkey, (B, NUM_COLS, CHANNELS), jnp.float32)

    fwd = jax.jit(ft_transformer_convs, static_argnums=2)
    x_out, x_cls = fwd(x, params, NHEAD)
    jax.block_until_ready((x_out, x_cls))

    assert x_out.shape == (B, NUM_COLS, CHANNELS)
    assert x_cls.shape == (B, CHANNELS)
    assert bool(jnp.all(jnp.isfinite(x_out))) and bool(jnp.all(jnp.isfinite(x_cls)))
    print("KERNEL_OK")
</pallas_src>

<mosaic_0001>
module attributes {stable_mosaic.version = 11 : i64} {
  func.func @_fused_kernel(%arg0: i32, %arg1: i32, %arg2: memref<1x16x64xf32, #tpu.memory_space<vmem>>, %arg3: memref<1x64x192xbf16, #tpu.memory_space<vmem>>, %arg4: memref<1x64x64xbf16, #tpu.memory_space<vmem>>, %arg5: memref<1x64x64xbf16, #tpu.memory_space<vmem>>, %arg6: memref<1x64x64xbf16, #tpu.memory_space<vmem>>, %arg7: memref<1x8x192xf32, #tpu.memory_space<vmem>>, %arg8: memref<2x64xf32, #tpu.memory_space<vmem>>, %arg9: memref<1x16x64xf32, #tpu.memory_space<vmem>>) attributes {dimension_semantics = [#tpu.dimension_semantics<parallel>, #tpu.dimension_semantics<arbitrary>], iteration_bounds = array<i64: 2, 3>, scalar_prefetch = 0 : i64, scratch_operands = 0 : i64, tpu.core_type = #tpu.core_type<tc>, window_params = [{transform_indices = @transform_0, window_bounds = array<i64: 1, 16, 64>}, {transform_indices = @transform_1, window_bounds = array<i64: 1, 64, 192>}, {transform_indices = @transform_2, window_bounds = array<i64: 1, 64, 64>}, {transform_indices = @transform_3, window_bounds = array<i64: 1, 64, 64>}, {transform_indices = @transform_4, window_bounds = array<i64: 1, 64, 64>}, {transform_indices = @transform_5, window_bounds = array<i64: 1, 8, 192>}, {pipeline_mode = #tpu.pipeline_mode<synchronous>, transform_indices = @transform_6, window_bounds = array<i64: 2, 64>}, {transform_indices = @transform_7, window_bounds = array<i64: 1, 16, 64>}]} {
    %c0_i32 = arith.constant 0 : i32
    %0 = arith.cmpi eq, %arg1, %c0_i32 : i32
    %1 = arith.extui %0 : i1 to i32
    %c0_i32_0 = arith.constant 0 : i32
    %2 = arith.cmpi ne, %1, %c0_i32_0 : i32
    scf.if %2 {
      %c0_70 = arith.constant 0 : index
      %c0_71 = arith.constant 0 : index
      %c0_72 = arith.constant 0 : index
      %269 = vector.load %arg2[%c0_70, %c0_71, %c0_72] : memref<1x16x64xf32, #tpu.memory_space<vmem>>, vector<1x16x64xf32>
      %c0_73 = arith.constant 0 : index
      %c0_74 = arith.constant 0 : index
      %c0_75 = arith.constant 0 : index
      %270 = vector.load %arg9[%c0_73, %c0_74, %c0_75] : memref<1x16x64xf32, #tpu.memory_space<vmem>>, vector<1x16x64xf32>
      tpu.vector_store %arg9[%c0_73, %c0_74, %c0_75], %269 {strides = array<i32>} : memref<1x16x64xf32, #tpu.memory_space<vmem>>, vector<1x16x64xf32>,
    } else {
    }
    %c0 = arith.constant 0 : index
    %c0_1 = arith.constant 0 : index
    %c0_2 = arith.constant 0 : index
    %3 = vector.load %arg9[%c0, %c0_1, %c0_2] : memref<1x16x64xf32, #tpu.memory_space<vmem>>, vector<1x16x64xf32>
    %4 = vector.shape_cast %3 : vector<1x16x64xf32> to vector<16x64xf32>
    %c0_3 = arith.constant 0 : index
    %c0_4 = arith.constant 0 : index
    %c0_5 = arith.constant 0 : index
    %5 = vector.load %arg3[%c0_3, %c0_4, %c0_5] : memref<1x64x192xbf16, #tpu.memory_space<vmem>>, vector<1x64x192xbf16>
    %6 = vector.shape_cast %5 : vector<1x64x192xbf16> to vector<64x192xbf16>
    %c0_6 = arith.constant 0 : index
    %c0_7 = arith.constant 0 : index
    %c0_8 = arith.constant 0 : index
    %7 = vector.load %arg4[%c0_6, %c0_7, %c0_8] : memref<1x64x64xbf16, #tpu.memory_space<vmem>>, vector<1x64x64xbf16>
    %8 = vector.shape_cast %7 : vector<1x64x64xbf16> to vector<64x64xbf16>
    %c0_9 = arith.constant 0 : index
    %c0_10 = arith.constant 0 : index
    %c0_11 = arith.constant 0 : index
    %9 = vector.load %arg5[%c0_9, %c0_10, %c0_11] : memref<1x64x64xbf16, #tpu.memory_space<vmem>>, vector<1x64x64xbf16>
    %10 = vector.shape_cast %9 : vector<1x64x64xbf16> to vector<64x64xbf16>
    %c0_12 = arith.constant 0 : index
    %c0_13 = arith.constant 0 : index
    %c0_14 = arith.constant 0 : index
    %11 = vector.load %arg6[%c0_12, %c0_13, %c0_14] : memref<1x64x64xbf16, #tpu.memory_space<vmem>>, vector<1x64x64xbf16>
    %12 = vector.shape_cast %11 : vector<1x64x64xbf16> to vector<64x64xbf16>
    %c0_15 = arith.constant 0 : index
    %c0_16 = arith.constant 0 : index
    %c0_17 = arith.constant 0 : index
    %13 = vector.load %arg7[%c0_15, %c0_16, %c0_17] : memref<1x8x192xf32, #tpu.memory_space<vmem>>, vector<1x8x192xf32>
    %14 = vector.shape_cast %13 : vector<1x8x192xf32> to vector<8x192xf32>
    %15 = vector.extract_strided_slice %14 {offsets = [0, 0], sizes = [1, 192], strides = [1, 1]} : vector<8x192xf32> to vector<1x192xf32>
    %16 = vector.extract_strided_slice %14 {offsets = [1, 0], sizes = [1, 64], strides = [1, 1]} : vector<8x192xf32> to vector<1x64xf32>
    %17 = vector.extract_strided_slice %14 {offsets = [2, 0], sizes = [1, 64], strides = [1, 1]} : vector<8x192xf32> to vector<1x64xf32>
    %18 = vector.extract_strided_slice %14 {offsets = [3, 0], sizes = [1, 64], strides = [1, 1]} : vector<8x192xf32> to vector<1x64xf32>
    %19 = vector.extract_strided_slice %14 {offsets = [4, 0], sizes = [1, 64], strides = [1, 1]} : vector<8x192xf32> to vector<1x64xf32>
    %20 = vector.extract_strided_slice %14 {offsets = [5, 0], sizes = [1, 64], strides = [1, 1]} : vector<8x192xf32> to vector<1x64xf32>
    %21 = vector.extract_strided_slice %14 {offsets = [6, 0], sizes = [1, 64], strides = [1, 1]} : vector<8x192xf32> to vector<1x64xf32>
    %22 = vector.extract_strided_slice %14 {offsets = [7, 0], sizes = [1, 64], strides = [1, 1]} : vector<8x192xf32> to vector<1x64xf32>
    %23 = arith.truncf %4 : vector<16x64xf32> to vector<16x64xbf16>
    %cst = arith.constant dense<0.000000e+00> : vector<16x192xf32>
    %24 = tpu.matmul %23, %6, %cst {dimension_numbers = #tpu.dot_dimension_numbers<[1], [0], [0], [1], [0, 0, 1, 1], [], []>} : vector<16x64xbf16>, vector<64x192xbf16>, vector<16x192xf32> -> vector<16x192xf32>
    %25 = vector.broadcast %15 : vector<1x192xf32> to vector<16x192xf32>
    %26 = arith.addf %24, %25 : vector<16x192xf32>
    %27 = vector.shape_cast %26 : vector<16x192xf32> to vector<1x16x192xf32>
    %28 = tpu.iota {dimensions = array<i32: 2>} : vector<1x1x16xi32>
    %c9_i32 = arith.constant 9 : i32
    %29 = vector.broadcast %c9_i32 : i32 to vector<1x1x16xi32>
    %30 = arith.cmpi slt, %28, %29 : vector<1x1x16xi32>
    %cst_18 = arith.constant 0.000000e+00 : f32
    %cst_19 = arith.constant -1.000000e+30 : f32
    %31 = vector.broadcast %cst_18 : f32 to vector<1x1x16xf32>
    %32 = vector.broadcast %cst_19 : f32 to vector<1x1x16xf32>
    %33 = arith.select %30, %31, %32 : vector<1x1x16xi1>, vector<1x1x16xf32>
    %34 = vector.extract_strided_slice %27 {offsets = [0, 0, 0], sizes = [1, 16, 8], strides = [1, 1, 1]} : vector<1x16x192xf32> to vector<1x16x8xf32>
    %35 = arith.truncf %34 : vector<1x16x8xf32> to vector<1x16x8xbf16>
    %36 = vector.extract_strided_slice %27 {offsets = [0, 0, 64], sizes = [1, 16, 8], strides = [1, 1, 1]} : vector<1x16x192xf32> to vector<1x16x8xf32>
    %37 = arith.truncf %36 : vector<1x16x8xf32> to vector<1x16x8xbf16>
    %38 = vector.extract_strided_slice %27 {offsets = [0, 0, 128], sizes = [1, 16, 8], strides = [1, 1, 1]} : vector<1x16x192xf32> to vector<1x16x8xf32>
    %39 = arith.truncf %38 : vector<1x16x8xf32> to vector<1x16x8xbf16>
    "tpu.trace_start"() <{level = 10 : i32, message = "bqd,bkd->bqk"}> : () -> ()
    %cst_20 = arith.constant dense<0.000000e+00> : vector<1x16x16xf32>
    %40 = tpu.matmul %35, %37, %cst_20 {dimension_numbers = #tpu.dot_dimension_numbers<[2], [2], [1], [1], [0, 0, 0, 1, 1, 1], [0], [0]>} : vector<1x16x8xbf16>, vector<1x16x8xbf16>, vector<1x16x16xf32> -> vector<1x16x16xf32>
    "tpu.trace_stop"() : () -> ()
    %41 = vector.broadcast %33 : vector<1x1x16xf32> to vector<1x16x16xf32>
    %42 = arith.addf %40, %41 : vector<1x16x16xf32>
    %cst_21 = arith.constant dense<0xFF800000> : vector<1x16xf32>
    %43 = vector.multi_reduction <maximumf>, %42, %cst_21 [2] : vector<1x16x16xf32> to vector<1x16xf32>
    %44 = vector.shape_cast %43 : vector<1x16xf32> to vector<1x16x1xf32>
    %45 = vector.broadcast %44 : vector<1x16x1xf32> to vector<1x16x16xf32>
    %46 = arith.subf %42, %45 : vector<1x16x16xf32>
    %47 = math.exp %46 : vector<1x16x16xf32>
    %cst_22 = arith.constant dense<0.000000e+00> : vector<1x16xf32>
    %48 = vector.multi_reduction <add>, %47, %cst_22 [2] : vector<1x16x16xf32> to vector<1x16xf32>
    %49 = vector.shape_cast %48 : vector<1x16xf32> to vector<1x16x1xf32>
    %50 = tpu.reciprocal %49 : vector<1x16x1xf32> -> vector<1x16x1xf32>
    %51 = vector.broadcast %50 : vector<1x16x1xf32> to vector<1x16x16xf32>
    %52 = arith.mulf %47, %51 : vector<1x16x16xf32>
    %53 = arith.truncf %52 : vector<1x16x16xf32> to vector<1x16x16xbf16>
    "tpu.trace_start"() <{level = 10 : i32, message = "bqk,bkd->bqd"}> : () -> ()
    %cst_23 = arith.constant dense<0.000000e+00> : vector<1x16x8xf32>
    %54 = tpu.matmul %53, %39, %cst_23 {dimension_numbers = #tpu.dot_dimension_numbers<[2], [1], [1], [2], [0, 0, 0, 1, 1, 2], [0], [0]>} : vector<1x16x16xbf16>, vector<1x16x8xbf16>, vector<1x16x8xf32> -> vector<1x16x8xf32>
    "tpu.trace_stop"() : () -> ()
    %55 = vector.extract_strided_slice %27 {offsets = [0, 0, 8], sizes = [1, 16, 8], strides = [1, 1, 1]} : vector<1x16x192xf32> to vector<1x16x8xf32>
    %56 = arith.truncf %55 : vector<1x16x8xf32> to vector<1x16x8xbf16>
    %57 = vector.extract_strided_slice %27 {offsets = [0, 0, 72], sizes = [1, 16, 8], strides = [1, 1, 1]} : vector<1x16x192xf32> to vector<1x16x8xf32>
    %58 = arith.truncf %57 : vector<1x16x8xf32> to vector<1x16x8xbf16>
    %59 = vector.extract_strided_slice %27 {offsets = [0, 0, 136], sizes = [1, 16, 8], strides = [1, 1, 1]} : vector<1x16x192xf32> to vector<1x16x8xf32>
    %60 = arith.truncf %59 : vector<1x16x8xf32> to vector<1x16x8xbf16>
    "tpu.trace_start"() <{level = 10 : i32, message = "bqd,bkd->bqk"}> : () -> ()
    %cst_24 = arith.constant dense<0.000000e+00> : vector<1x16x16xf32>
    %61 = tpu.matmul %56, %58, %cst_24 {dimension_numbers = #tpu.dot_dimension_numbers<[2], [2], [1], [1], [0, 0, 0, 1, 1, 1], [0], [0]>} : vector<1x16x8xbf16>, vector<1x16x8xbf16>, vector<1x16x16xf32> -> vector<1x16x16xf32>
    "tpu.trace_stop"() : () -> ()
    %62 = vector.broadcast %33 : vector<1x1x16xf32> to vector<1x16x16xf32>
    %63 = arith.addf %61, %62 : vector<1x16x16xf32>
    %cst_25 = arith.constant dense<0xFF800000> : vector<1x16xf32>
    %64 = vector.multi_reduction <maximumf>, %63, %cst_25 [2] : vector<1x16x16xf32> to vector<1x16xf32>
    %65 = vector.shape_cast %64 : vector<1x16xf32> to vector<1x16x1xf32>
    %66 = vector.broadcast %65 : vector<1x16x1xf32> to vector<1x16x16xf32>
    %67 = arith.subf %63, %66 : vector<1x16x16xf32>
    %68 = math.exp %67 : vector<1x16x16xf32>
    %cst_26 = arith.constant dense<0.000000e+00> : vector<1x16xf32>
    %69 = vector.multi_reduction <add>, %68, %cst_26 [2] : vector<1x16x16xf32> to vector<1x16xf32>
    %70 = vector.shape_cast %69 : vector<1x16xf32> to vector<1x16x1xf32>
    %71 = tpu.reciprocal %70 : vector<1x16x1xf32> -> vector<1x16x1xf32>
    %72 = vector.broadcast %71 : vector<1x16x1xf32> to vector<1x16x16xf32>
    %73 = arith.mulf %68, %72 : vector<1x16x16xf32>
    %74 = arith.truncf %73 : vector<1x16x16xf32> to vector<1x16x16xbf16>
    "tpu.trace_start"() <{level = 10 : i32, message = "bqk,bkd->bqd"}> : () -> ()
    %cst_27 = arith.constant dense<0.000000e+00> : vector<1x16x8xf32>
    %75 = tpu.matmul %74, %60, %cst_27 {dimension_numbers = #tpu.dot_dimension_numbers<[2], [1], [1], [2], [0, 0, 0, 1, 1, 2], [0], [0]>} : vector<1x16x16xbf16>, vector<1x16x8xbf16>, vector<1x16x8xf32> -> vector<1x16x8xf32>
    "tpu.trace_stop"() : () -> ()
    %76 = vector.extract_strided_slice %27 {offsets = [0, 0, 16], sizes = [1, 16, 8], strides = [1, 1, 1]} : vector<1x16x192xf32> to vector<1x16x8xf32>
    %77 = arith.truncf %76 : vector<1x16x8xf32> to vector<1x16x8xbf16>
    %78 = vector.extract_strided_slice %27 {offsets = [0, 0, 80], sizes = [1, 16, 8], strides = [1, 1, 1]} : vector<1x16x192xf32> to vector<1x16x8xf32>
    %79 = arith.truncf %78 : vector<1x16x8xf32> to vector<1x16x8xbf16>
    %80 = vector.extract_strided_slice %27 {offsets = [0, 0, 144], sizes = [1, 16, 8], strides = [1, 1, 1]} : vector<1x16x192xf32> to vector<1x16x8xf32>
    %81 = arith.truncf %80 : vector<1x16x8xf32> to vector<1x16x8xbf16>
    "tpu.trace_start"() <{level = 10 : i32, message = "bqd,bkd->bqk"}> : () -> ()
    %cst_28 = arith.constant dense<0.000000e+00> : vector<1x16x16xf32>
    %82 = tpu.matmul %77, %79, %cst_28 {dimension_numbers = #tpu.dot_dimension_numbers<[2], [2], [1], [1], [0, 0, 0, 1, 1, 1], [0], [0]>} : vector<1x16x8xbf16>, vector<1x16x8xbf16>, vector<1x16x16xf32> -> vector<1x16x16xf32>
    "tpu.trace_stop"() : () -> ()
    %83 = vector.broadcast %33 : vector<1x1x16xf32> to vector<1x16x16xf32>
    %84 = arith.addf %82, %83 : vector<1x16x16xf32>
    %cst_29 = arith.constant dense<0xFF800000> : vector<1x16xf32>
    %85 = vector.multi_reduction <maximumf>, %84, %cst_29 [2] : vector<1x16x16xf32> to vector<1x16xf32>
    %86 = vector.shape_cast %85 : vector<1x16xf32> to vector<1x16x1xf32>
    %87 = vector.broadcast %86 : vector<1x16x1xf32> to vector<1x16x16xf32>
    %88 = arith.subf %84, %87 : vector<1x16x16xf32>
    %89 = math.exp %88 : vector<1x16x16xf32>
    %cst_30 = arith.constant dense<0.000000e+00> : vector<1x16xf32>
    %90 = vector.multi_reduction <add>, %89, %cst_30 [2] : vector<1x16x16xf32> to vector<1x16xf32>
    %91 = vector.shape_cast %90 : vector<1x16xf32> to vector<1x16x1xf32>
    %92 = tpu.reciprocal %91 : vector<1x16x1xf32> -> vector<1x16x1xf32>
    %93 = vector.broadcast %92 : vector<1x16x1xf32> to vector<1x16x16xf32>
    %94 = arith.mulf %89, %93 : vector<1x16x16xf32>
    %95 = arith.truncf %94 : vector<1x16x16xf32> to vector<1x16x16xbf16>
    "tpu.trace_start"() <{level = 10 : i32, message = "bqk,bkd->bqd"}> : () -> ()
    %cst_31 = arith.constant dense<0.000000e+00> : vector<1x16x8xf32>
    %96 = tpu.matmul %95, %81, %cst_31 {dimension_numbers = #tpu.dot_dimension_numbers<[2], [1], [1], [2], [0, 0, 0, 1, 1, 2], [0], [0]>} : vector<1x16x16xbf16>, vector<1x16x8xbf16>, vector<1x16x8xf32> -> vector<1x16x8xf32>
    "tpu.trace_stop"() : () -> ()
    %97 = vector.extract_strided_slice %27 {offsets = [0, 0, 24], sizes = [1, 16, 8], strides = [1, 1, 1]} : vector<1x16x192xf32> to vector<1x16x8xf32>
    %98 = arith.truncf %97 : vector<1x16x8xf32> to vector<1x16x8xbf16>
    %99 = vector.extract_strided_slice %27 {offsets = [0, 0, 88], sizes = [1, 16, 8], strides = [1, 1, 1]} : vector<1x16x192xf32> to vector<1x16x8xf32>
    %100 = arith.truncf %99 : vector<1x16x8xf32> to vector<1x16x8xbf16>
    %101 = vector.extract_strided_slice %27 {offsets = [0, 0, 152], sizes = [1, 16, 8], strides = [1, 1, 1]} : vector<1x16x192xf32> to vector<1x16x8xf32>
    %102 = arith.truncf %101 : vector<1x16x8xf32> to vector<1x16x8xbf16>
    "tpu.trace_start"() <{level = 10 : i32, message = "bqd,bkd->bqk"}> : () -> ()
    %cst_32 = arith.constant dense<0.000000e+00> : vector<1x16x16xf32>
    %103 = tpu.matmul %98, %100, %cst_32 {dimension_numbers = #tpu.dot_dimension_numbers<[2], [2], [1], [1], [0, 0, 0, 1, 1, 1], [0], [0]>} : vector<1x16x8xbf16>, vector<1x16x8xbf16>, vector<1x16x16xf32> -> vector<1x16x16xf32>
    "tpu.trace_stop"() : () -> ()
    %104 = vector.broadcast %33 : vector<1x1x16xf32> to vector<1x16x16xf32>
    %105 = arith.addf %103, %104 : vector<1x16x16xf32>
    %cst_33 = arith.constant dense<0xFF800000> : vector<1x16xf32>
    %106 = vector.multi_reduction <maximumf>, %105, %cst_33 [2] : vector<1x16x16xf32> to vector<1x16xf32>
    %107 = vector.shape_cast %106 : vector<1x16xf32> to vector<1x16x1xf32>
    %108 = vector.broadcast %107 : vector<1x16x1xf32> to vector<1x16x16xf32>
    %109 = arith.subf %105, %108 : vector<1x16x16xf32>
    %110 = math.exp %109 : vector<1x16x16xf32>
    %cst_34 = arith.constant dense<0.000000e+00> : vector<1x16xf32>
    %111 = vector.multi_reduction <add>, %110, %cst_34 [2] : vector<1x16x16xf32> to vector<1x16xf32>
    %112 = vector.shape_cast %111 : vector<1x16xf32> to vector<1x16x1xf32>
    %113 = tpu.reciprocal %112 : vector<1x16x1xf32> -> vector<1x16x1xf32>
    %114 = vector.broadcast %113 : vector<1x16x1xf32> to vector<1x16x16xf32>
    %115 = arith.mulf %110, %114 : vector<1x16x16xf32>
    %116 = arith.truncf %115 : vector<1x16x16xf32> to vector<1x16x16xbf16>
    "tpu.trace_start"() <{level = 10 : i32, message = "bqk,bkd->bqd"}> : () -> ()
    %cst_35 = arith.constant dense<0.000000e+00> : vector<1x16x8xf32>
    %117 = tpu.matmul %116, %102, %cst_35 {dimension_numbers = #tpu.dot_dimension_numbers<[2], [1], [1], [2], [0, 0, 0, 1, 1, 2], [0], [0]>} : vector<1x16x16xbf16>, vector<1x16x8xbf16>, vector<1x16x8xf32> -> vector<1x16x8xf32>
    "tpu.trace_stop"() : () -> ()
    %118 = vector.extract_strided_slice %27 {offsets = [0, 0, 32], sizes = [1, 16, 8], strides = [1, 1, 1]} : vector<1x16x192xf32> to vector<1x16x8xf32>
    %119 = arith.truncf %118 : vector<1x16x8xf32> to vector<1x16x8xbf16>
    %120 = vector.extract_strided_slice %27 {offsets = [0, 0, 96], sizes = [1, 16, 8], strides = [1, 1, 1]} : vector<1x16x192xf32> to vector<1x16x8xf32>
    %121 = arith.truncf %120 : vector<1x16x8xf32> to vector<1x16x8xbf16>
    %122 = vector.extract_strided_slice %27 {offsets = [0, 0, 160], sizes = [1, 16, 8], strides = [1, 1, 1]} : vector<1x16x192xf32> to vector<1x16x8xf32>
    %123 = arith.truncf %122 : vector<1x16x8xf32> to vector<1x16x8xbf16>
    "tpu.trace_start"() <{level = 10 : i32, message = "bqd,bkd->bqk"}> : () -> ()
    %cst_36 = arith.constant dense<0.000000e+00> : vector<1x16x16xf32>
    %124 = tpu.matmul %119, %121, %cst_36 {dimension_numbers = #tpu.dot_dimension_numbers<[2], [2], [1], [1], [0, 0, 0, 1, 1, 1], [0], [0]>} : vector<1x16x8xbf16>, vector<1x16x8xbf16>, vector<1x16x16xf32> -> vector<1x16x16xf32>
    "tpu.trace_stop"() : () -> ()
    %125 = vector.broadcast %33 : vector<1x1x16xf32> to vector<1x16x16xf32>
    %126 = arith.addf %124, %125 : vector<1x16x16xf32>
    %cst_37 = arith.constant dense<0xFF800000> : vector<1x16xf32>
    %127 = vector.multi_reduction <maximumf>, %126, %cst_37 [2] : vector<1x16x16xf32> to vector<1x16xf32>
    %128 = vector.shape_cast %127 : vector<1x16xf32> to vector<1x16x1xf32>
    %129 = vector.broadcast %128 : vector<1x16x1xf32> to vector<1x16x16xf32>
    %130 = arith.subf %126, %129 : vector<1x16x16xf32>
    %131 = math.exp %130 : vector<1x16x16xf32>
    %cst_38 = arith.constant dense<0.000000e+00> : vector<1x16xf32>
    %132 = vector.multi_reduction <add>, %131, %cst_38 [2] : vector<1x16x16xf32> to vector<1x16xf32>
    %133 = vector.shape_cast %132 : vector<1x16xf32> to vector<1x16x1xf32>
    %134 = tpu.reciprocal %133 : vector<1x16x1xf32> -> vector<1x16x1xf32>
    %135 = vector.broadcast %134 : vector<1x16x1xf32> to vector<1x16x16xf32>
    %136 = arith.mulf %131, %135 : vector<1x16x16xf32>
    %137 = arith.truncf %136 : vector<1x16x16xf32> to vector<1x16x16xbf16>
    "tpu.trace_start"() <{level = 10 : i32, message = "bqk,bkd->bqd"}> : () -> ()
    %cst_39 = arith.constant dense<0.000000e+00> : vector<1x16x8xf32>
    %138 = tpu.matmul %137, %123, %cst_39 {dimension_numbers = #tpu.dot_dimension_numbers<[2], [1], [1], [2], [0, 0, 0, 1, 1, 2], [0], [0]>} : vector<1x16x16xbf16>, vector<1x16x8xbf16>, vector<1x16x8xf32> -> vector<1x16x8xf32>
    "tpu.trace_stop"() : () -> ()
    %139 = vector.extract_strided_slice %27 {offsets = [0, 0, 40], sizes = [1, 16, 8], strides = [1, 1, 1]} : vector<1x16x192xf32> to vector<1x16x8xf32>
    %140 = arith.truncf %139 : vector<1x16x8xf32> to vector<1x16x8xbf16>
    %141 = vector.extract_strided_slice %27 {offsets = [0, 0, 104], sizes = [1, 16, 8], strides = [1, 1, 1]} : vector<1x16x192xf32> to vector<1x16x8xf32>
    %142 = arith.truncf %141 : vector<1x16x8xf32> to vector<1x16x8xbf16>
    %143 = vector.extract_strided_slice %27 {offsets = [0, 0, 168], sizes = [1, 16, 8], strides = [1, 1, 1]} : vector<1x16x192xf32> to vector<1x16x8xf32>
    %144 = arith.truncf %143 : vector<1x16x8xf32> to vector<1x16x8xbf16>
    "tpu.trace_start"() <{level = 10 : i32, message = "bqd,bkd->bqk"}> : () -> ()
    %cst_40 = arith.constant dense<0.000000e+00> : vector<1x16x16xf32>
    %145 = tpu.matmul %140, %142, %cst_40 {dimension_numbers = #tpu.dot_dimension_numbers<[2], [2], [1], [1], [0, 0, 0, 1, 1, 1], [0], [0]>} : vector<1x16x8xbf16>, vector<1x16x8xbf16>, vector<1x16x16xf32> -> vector<1x16x16xf32>
    "tpu.trace_stop"() : () -> ()
    %146 = vector.broadcast %33 : vector<1x1x16xf32> to vector<1x16x16xf32>
    %147 = arith.addf %145, %146 : vector<1x16x16xf32>
    %cst_41 = arith.constant dense<0xFF800000> : vector<1x16xf32>
    %148 = vector.multi_reduction <maximumf>, %147, %cst_41 [2] : vector<1x16x16xf32> to vector<1x16xf32>
    %149 = vector.shape_cast %148 : vector<1x16xf32> to vector<1x16x1xf32>
    %150 = vector.broadcast %149 : vector<1x16x1xf32> to vector<1x16x16xf32>
    %151 = arith.subf %147, %150 : vector<1x16x16xf32>
    %152 = math.exp %151 : vector<1x16x16xf32>
    %cst_42 = arith.constant dense<0.000000e+00> : vector<1x16xf32>
    %153 = vector.multi_reduction <add>, %152, %cst_42 [2] : vector<1x16x16xf32> to vector<1x16xf32>
    %154 = vector.shape_cast %153 : vector<1x16xf32> to vector<1x16x1xf32>
    %155 = tpu.reciprocal %154 : vector<1x16x1xf32> -> vector<1x16x1xf32>
    %156 = vector.broadcast %155 : vector<1x16x1xf32> to vector<1x16x16xf32>
    %157 = arith.mulf %152, %156 : vector<1x16x16xf32>
    %158 = arith.truncf %157 : vector<1x16x16xf32> to vector<1x16x16xbf16>
    "tpu.trace_start"() <{level = 10 : i32, message = "bqk,bkd->bqd"}> : () -> ()
    %cst_43 = arith.constant dense<0.000000e+00> : vector<1x16x8xf32>
    %159 = tpu.matmul %158, %144, %cst_43 {dimension_numbers = #tpu.dot_dimension_numbers<[2], [1], [1], [2], [0, 0, 0, 1, 1, 2], [0], [0]>} : vector<1x16x16xbf16>, vector<1x16x8xbf16>, vector<1x16x8xf32> -> vector<1x16x8xf32>
    "tpu.trace_stop"() : () -> ()
    %160 = vector.extract_strided_slice %27 {offsets = [0, 0, 48], sizes = [1, 16, 8], strides = [1, 1, 1]} : vector<1x16x192xf32> to vector<1x16x8xf32>
    %161 = arith.truncf %160 : vector<1x16x8xf32> to vector<1x16x8xbf16>
    %162 = vector.extract_strided_slice %27 {offsets = [0, 0, 112], sizes = [1, 16, 8], strides = [1, 1, 1]} : vector<1x16x192xf32> to vector<1x16x8xf32>
    %163 = arith.truncf %162 : vector<1x16x8xf32> to vector<1x16x8xbf16>
    %164 = vector.extract_strided_slice %27 {offsets = [0, 0, 176], sizes = [1, 16, 8], strides = [1, 1, 1]} : vector<1x16x192xf32> to vector<1x16x8xf32>
    %165 = arith.truncf %164 : vector<1x16x8xf32> to vector<1x16x8xbf16>
    "tpu.trace_start"() <{level = 10 : i32, message = "bqd,bkd->bqk"}> : () -> ()
    %cst_44 = arith.constant dense<0.000000e+00> : vector<1x16x16xf32>
    %166 = tpu.matmul %161, %163, %cst_44 {dimension_numbers = #tpu.dot_dimension_numbers<[2], [2], [1], [1], [0, 0, 0, 1, 1, 1], [0], [0]>} : vector<1x16x8xbf16>, vector<1x16x8xbf16>, vector<1x16x16xf32> -> vector<1x16x16xf32>
    "tpu.trace_stop"() : () -> ()
    %167 = vector.broadcast %33 : vector<1x1x16xf32> to vector<1x16x16xf32>
    %168 = arith.addf %166, %167 : vector<1x16x16xf32>
    %cst_45 = arith.constant dense<0xFF800000> : vector<1x16xf32>
    %169 = vector.multi_reduction <maximumf>, %168, %cst_45 [2] : vector<1x16x16xf32> to vector<1x16xf32>
    %170 = vector.shape_cast %169 : vector<1x16xf32> to vector<1x16x1xf32>
    %171 = vector.broadcast %170 : vector<1x16x1xf32> to vector<1x16x16xf32>
    %172 = arith.subf %168, %171 : vector<1x16x16xf32>
    %173 = math.exp %172 : vector<1x16x16xf32>
    %cst_46 = arith.constant dense<0.000000e+00> : vector<1x16xf32>
    %174 = vector.multi_reduction <add>, %173, %cst_46 [2] : vector<1x16x16xf32> to vector<1x16xf32>
    %175 = vector.shape_cast %174 : vector<1x16xf32> to vector<1x16x1xf32>
    %176 = tpu.reciprocal %175 : vector<1x16x1xf32> -> vector<1x16x1xf32>
    %177 = vector.broadcast %176 : vector<1x16x1xf32> to vector<1x16x16xf32>
    %178 = arith.mulf %173, %177 : vector<1x16x16xf32>
    %179 = arith.truncf %178 : vector<1x16x16xf32> to vector<1x16x16xbf16>
    "tpu.trace_start"() <{level = 10 : i32, message = "bqk,bkd->bqd"}> : () -> ()
    %cst_47 = arith.constant dense<0.000000e+00> : vector<1x16x8xf32>
    %180 = tpu.matmul %179, %165, %cst_47 {dimension_numbers = #tpu.dot_dimension_numbers<[2], [1], [1], [2], [0, 0, 0, 1, 1, 2], [0], [0]>} : vector<1x16x16xbf16>, vector<1x16x8xbf16>, vector<1x16x8xf32> -> vector<1x16x8xf32>
    "tpu.trace_stop"() : () -> ()
    %181 = vector.extract_strided_slice %27 {offsets = [0, 0, 56], sizes = [1, 16, 8], strides = [1, 1, 1]} : vector<1x16x192xf32> to vector<1x16x8xf32>
    %182 = arith.truncf %181 : vector<1x16x8xf32> to vector<1x16x8xbf16>
    %183 = vector.extract_strided_slice %27 {offsets = [0, 0, 120], sizes = [1, 16, 8], strides = [1, 1, 1]} : vector<1x16x192xf32> to vector<1x16x8xf32>
    %184 = arith.truncf %183 : vector<1x16x8xf32> to vector<1x16x8xbf16>
    %185 = vector.extract_strided_slice %27 {offsets = [0, 0, 184], sizes = [1, 16, 8], strides = [1, 1, 1]} : vector<1x16x192xf32> to vector<1x16x8xf32>
    %186 = arith.truncf %185 : vector<1x16x8xf32> to vector<1x16x8xbf16>
    "tpu.trace_start"() <{level = 10 : i32, message = "bqd,bkd->bqk"}> : () -> ()
    %cst_48 = arith.constant dense<0.000000e+00> : vector<1x16x16xf32>
    %187 = tpu.matmul %182, %184, %cst_48 {dimension_numbers = #tpu.dot_dimension_numbers<[2], [2], [1], [1], [0, 0, 0, 1, 1, 1], [0], [0]>} : vector<1x16x8xbf16>, vector<1x16x8xbf16>, vector<1x16x16xf32> -> vector<1x16x16xf32>
    "tpu.trace_stop"() : () -> ()
    %188 = vector.broadcast %33 : vector<1x1x16xf32> to vector<1x16x16xf32>
    %189 = arith.addf %187, %188 : vector<1x16x16xf32>
    %cst_49 = arith.constant dense<0xFF800000> : vector<1x16xf32>
    %190 = vector.multi_reduction <maximumf>, %189, %cst_49 [2] : vector<1x16x16xf32> to vector<1x16xf32>
    %191 = vector.shape_cast %190 : vector<1x16xf32> to vector<1x16x1xf32>
    %192 = vector.broadcast %191 : vector<1x16x1xf32> to vector<1x16x16xf32>
    %193 = arith.subf %189, %192 : vector<1x16x16xf32>
    %194 = math.exp %193 : vector<1x16x16xf32>
    %cst_50 = arith.constant dense<0.000000e+00> : vector<1x16xf32>
    %195 = vector.multi_reduction <add>, %194, %cst_50 [2] : vector<1x16x16xf32> to vector<1x16xf32>
    %196 = vector.shape_cast %195 : vector<1x16xf32> to vector<1x16x1xf32>
    %197 = tpu.reciprocal %196 : vector<1x16x1xf32> -> vector<1x16x1xf32>
    %198 = vector.broadcast %197 : vector<1x16x1xf32> to vector<1x16x16xf32>
    %199 = arith.mulf %194, %198 : vector<1x16x16xf32>
    %200 = arith.truncf %199 : vector<1x16x16xf32> to vector<1x16x16xbf16>
    "tpu.trace_start"() <{level = 10 : i32, message = "bqk,bkd->bqd"}> : () -> ()
    %cst_51 = arith.constant dense<0.000000e+00> : vector<1x16x8xf32>
    %201 = tpu.matmul %200, %186, %cst_51 {dimension_numbers = #tpu.dot_dimension_numbers<[2], [1], [1], [2], [0, 0, 0, 1, 1, 2], [0], [0]>} : vector<1x16x16xbf16>, vector<1x16x8xbf16>, vector<1x16x8xf32> -> vector<1x16x8xf32>
    "tpu.trace_stop"() : () -> ()
    %202 = tpu.concatenate %54, %75, %96, %117, %138, %159, %180, %201 in 2 : vector<1x16x8xf32>, vector<1x16x8xf32>, vector<1x16x8xf32>, vector<1x16x8xf32>, vector<1x16x8xf32>, vector<1x16x8xf32>, vector<1x16x8xf32>, vector<1x16x8xf32> -> vector<1x16x64xf32>
    %203 = vector.shape_cast %202 : vector<1x16x64xf32> to vector<16x64xf32>
    %204 = arith.truncf %203 : vector<16x64xf32> to vector<16x64xbf16>
    %cst_52 = arith.constant dense<0.000000e+00> : vector<16x64xf32>
    %205 = tpu.matmul %204, %8, %cst_52 {dimension_numbers = #tpu.dot_dimension_numbers<[1], [0], [0], [1], [0, 0, 1, 1], [], []>} : vector<16x64xbf16>, vector<64x64xbf16>, vector<16x64xf32> -> vector<16x64xf32>
    %206 = vector.broadcast %16 : vector<1x64xf32> to vector<16x64xf32>
    %207 = arith.addf %205, %206 : vector<16x64xf32>
    %208 = arith.addf %4, %207 : vector<16x64xf32>
    %cst_53 = arith.constant dense<0.000000e+00> : vector<16xf32>
    %209 = vector.multi_reduction <add>, %208, %cst_53 [1] : vector<16x64xf32> to vector<16xf32>
    %210 = vector.shape_cast %209 : vector<16xf32> to vector<16x1xf32>
    %cst_54 = arith.constant 6.400000e+01 : f32
    %211 = vector.broadcast %cst_54 : f32 to vector<16x1xf32>
    %212 = arith.divf %210, %211 : vector<16x1xf32>
    %213 = vector.broadcast %212 : vector<16x1xf32> to vector<16x64xf32>
    %214 = arith.subf %208, %213 : vector<16x64xf32>
    %215 = arith.mulf %214, %214 : vector<16x64xf32>
    %cst_55 = arith.constant dense<0.000000e+00> : vector<16xf32>
    %216 = vector.multi_reduction <add>, %215, %cst_55 [1] : vector<16x64xf32> to vector<16xf32>
    %217 = vector.shape_cast %216 : vector<16xf32> to vector<16x1xf32>
    %cst_56 = arith.constant 6.400000e+01 : f32
    %218 = vector.broadcast %cst_56 : f32 to vector<16x1xf32>
    %219 = arith.divf %217, %218 : vector<16x1xf32>
    %220 = vector.broadcast %212 : vector<16x1xf32> to vector<16x64xf32>
    %221 = arith.subf %208, %220 : vector<16x64xf32>
    %cst_57 = arith.constant 9.99999974E-6 : f32
    %222 = vector.broadcast %cst_57 : f32 to vector<16x1xf32>
    %223 = arith.addf %219, %222 : vector<16x1xf32>
    %224 = math.rsqrt %223 : vector<16x1xf32>
    %225 = vector.broadcast %224 : vector<16x1xf32> to vector<16x64xf32>
    %226 = arith.mulf %221, %225 : vector<16x64xf32>
    %227 = vector.broadcast %19 : vector<1x64xf32> to vector<16x64xf32>
    %228 = arith.mulf %226, %227 : vector<16x64xf32>
    %229 = vector.broadcast %20 : vector<1x64xf32> to vector<16x64xf32>
    %230 = arith.addf %228, %229 : vector<16x64xf32>
    %231 = arith.truncf %230 : vector<16x64xf32> to vector<16x64xbf16>
    %cst_58 = arith.constant dense<0.000000e+00> : vector<16x64xf32>
    %232 = tpu.matmul %231, %10, %cst_58 {dimension_numbers = #tpu.dot_dimension_numbers<[1], [0], [0], [1], [0, 0, 1, 1], [], []>} : vector<16x64xbf16>, vector<64x64xbf16>, vector<16x64xf32> -> vector<16x64xf32>
    %233 = vector.broadcast %17 : vector<1x64xf32> to vector<16x64xf32>
    %234 = arith.addf %232, %233 : vector<16x64xf32>
    %cst_59 = arith.constant 0.000000e+00 : f32
    %235 = vector.broadcast %cst_59 : f32 to vector<16x64xf32>
    %236 = arith.maximumf %234, %235 : vector<16x64xf32>
    %237 = arith.truncf %236 : vector<16x64xf32> to vector<16x64xbf16>
    %cst_60 = arith.constant dense<0.000000e+00> : vector<16x64xf32>
    %238 = tpu.matmul %237, %12, %cst_60 {dimension_numbers = #tpu.dot_dimension_numbers<[1], [0], [0], [1], [0, 0, 1, 1], [], []>} : vector<16x64xbf16>, vector<64x64xbf16>, vector<16x64xf32> -> vector<16x64xf32>
    %239 = vector.broadcast %18 : vector<1x64xf32> to vector<16x64xf32>
    %240 = arith.addf %238, %239 : vector<16x64xf32>
    %241 = arith.addf %230, %240 : vector<16x64xf32>
    %cst_61 = arith.constant dense<0.000000e+00> : vector<16xf32>
    %242 = vector.multi_reduction <add>, %241, %cst_61 [1] : vector<16x64xf32> to vector<16xf32>
    %243 = vector.shape_cast %242 : vector<16xf32> to vector<16x1xf32>
    %cst_62 = arith.constant 6.400000e+01 : f32
    %244 = vector.broadcast %cst_62 : f32 to vector<16x1xf32>
    %245 = arith.divf %243, %244 : vector<16x1xf32>
    %246 = vector.broadcast %245 : vector<16x1xf32> to vector<16x64xf32>
    %247 = arith.subf %241, %246 : vector<16x64xf32>
    %248 = arith.mulf %247, %247 : vector<16x64xf32>
    %cst_63 = arith.constant dense<0.000000e+00> : vector<16xf32>
    %249 = vector.multi_reduction <add>, %248, %cst_63 [1] : vector<16x64xf32> to vector<16xf32>
    %250 = vector.shape_cast %249 : vector<16xf32> to vector<16x1xf32>
    %cst_64 = arith.constant 6.400000e+01 : f32
    %251 = vector.broadcast %cst_64 : f32 to vector<16x1xf32>
    %252 = arith.divf %250, %251 : vector<16x1xf32>
    %253 = vector.broadcast %245 : vector<16x1xf32> to vector<16x64xf32>
    %254 = arith.subf %241, %253 : vector<16x64xf32>
    %cst_65 = arith.constant 9.99999974E-6 : f32
    %255 = vector.broadcast %cst_65 : f32 to vector<16x1xf32>
    %256 = arith.addf %252, %255 : vector<16x1xf32>
    %257 = math.rsqrt %256 : vector<16x1xf32>
    %258 = vector.broadcast %257 : vector<16x1xf32> to vector<16x64xf32>
    %259 = arith.mulf %254, %258 : vector<16x64xf32>
    %260 = vector.broadcast %21 : vector<1x64xf32> to vector<16x64xf32>
    %261 = arith.mulf %259, %260 : vector<16x64xf32>
    %262 = vector.broadcast %22 : vector<1x64xf32> to vector<16x64xf32>
    %263 = arith.addf %261, %262 : vector<16x64xf32>
    %264 = vector.shape_cast %263 : vector<16x64xf32> to vector<1x16x64xf32>
    %c0_66 = arith.constant 0 : index
    %c0_67 = arith.constant 0 : index
    %c0_68 = arith.constant 0 : index
    %265 = vector.load %arg9[%c0_66, %c0_67, %c0_68] : memref<1x16x64xf32, #tpu.memory_space<vmem>>, vector<1x16x64xf32>
    tpu.vector_store %arg9[%c0_66, %c0_67, %c0_68], %264 {strides = array<i32>} : memref<1x16x64xf32, #tpu.memory_space<vmem>>, vector<1x16x64xf32>,
    %c2_i32 = arith.constant 2 : i32
    %266 = arith.cmpi eq, %arg1, %c2_i32 : i32
    %267 = arith.extui %266 : i1 to i32
    %c0_i32_69 = arith.constant 0 : i32
    %268 = arith.cmpi ne, %267, %c0_i32_69 : i32
    scf.if %268 {
      %c0_70 = arith.constant 0 : index
      %c0_71 = arith.constant 0 : index
      %269 = vector.load %arg8[%c0_70, %c0_71] : memref<2x64xf32, #tpu.memory_space<vmem>>, vector<1x64xf32>
      %c1 = arith.constant 1 : index
      %c0_72 = arith.constant 0 : index
      %270 = vector.load %arg8[%c1, %c0_72] : memref<2x64xf32, #tpu.memory_space<vmem>>, vector<1x64xf32>
      %cst_73 = arith.constant dense<0.000000e+00> : vector<16xf32>
      %271 = vector.multi_reduction <add>, %263, %cst_73 [1] : vector<16x64xf32> to vector<16xf32>
      %272 = vector.shape_cast %271 : vector<16xf32> to vector<16x1xf32>
      %cst_74 = arith.constant 6.400000e+01 : f32
      %273 = vector.broadcast %cst_74 : f32 to vector<16x1xf32>
      %274 = arith.divf %272, %273 : vector<16x1xf32>
      %275 = vector.broadcast %274 : vector<16x1xf32> to vector<16x64xf32>
      %276 = arith.subf %263, %275 : vector<16x64xf32>
      %277 = arith.mulf %276, %276 : vector<16x64xf32>
      %cst_75 = arith.constant dense<0.000000e+00> : vector<16xf32>
      %278 = vector.multi_reduction <add>, %277, %cst_75 [1] : vector<16x64xf32> to vector<16xf32>
      %279 = vector.shape_cast %278 : vector<16xf32> to vector<16x1xf32>
      %cst_76 = arith.constant 6.400000e+01 : f32
      %280 = vector.broadcast %cst_76 : f32 to vector<16x1xf32>
      %281 = arith.divf %279, %280 : vector<16x1xf32>
      %282 = vector.broadcast %274 : vector<16x1xf32> to vector<16x64xf32>
      %283 = arith.subf %263, %282 : vector<16x64xf32>
      %cst_77 = arith.constant 9.99999974E-6 : f32
      %284 = vector.broadcast %cst_77 : f32 to vector<16x1xf32>
      %285 = arith.addf %281, %284 : vector<16x1xf32>
      %286 = math.rsqrt %285 : vector<16x1xf32>
      %287 = vector.broadcast %286 : vector<16x1xf32> to vector<16x64xf32>
      %288 = arith.mulf %283, %287 : vector<16x64xf32>
      %289 = vector.broadcast %269 : vector<1x64xf32> to vector<16x64xf32>
      %290 = arith.mulf %288, %289 : vector<16x64xf32>
      %291 = vector.broadcast %270 : vector<1x64xf32> to vector<16x64xf32>
      %292 = arith.addf %290, %291 : vector<16x64xf32>
      %293 = vector.shape_cast %292 : vector<16x64xf32> to vector<1x16x64xf32>
      %c0_78 = arith.constant 0 : index
      %c0_79 = arith.constant 0 : index
      %c0_80 = arith.constant 0 : index
      %294 = vector.load %arg9[%c0_78, %c0_79, %c0_80] : memref<1x16x64xf32, #tpu.memory_space<vmem>>, vector<1x16x64xf32>
      tpu.vector_store %arg9[%c0_78, %c0_79, %c0_80], %293 {strides = array<i32>} : memref<1x16x64xf32, #tpu.memory_space<vmem>>, vector<1x16x64xf32>,
    } else {
    }
    return
  }
  func.func @transform_0(%arg0: i32, %arg1: i32) -> (i32, i32, i32) {
    %c0_i32 = arith.constant 0 : i32
    %c0_i32_0 = arith.constant 0 : i32
    %c0_i32_1 = arith.constant 0 : i32
    return %arg0, %c0_i32, %c0_i32_0 : i32, i32, i32
  }
  func.func @transform_1(%arg0: i32, %arg1: i32) -> (i32, i32, i32) {
    %c0_i32 = arith.constant 0 : i32
    %c0_i32_0 = arith.constant 0 : i32
    %c0_i32_1 = arith.constant 0 : i32
    return %arg1, %c0_i32, %c0_i32_0 : i32, i32, i32
  }
  func.func @transform_2(%arg0: i32, %arg1: i32) -> (i32, i32, i32) {
    %c0_i32 = arith.constant 0 : i32
    %c0_i32_0 = arith.constant 0 : i32
    %c0_i32_1 = arith.constant 0 : i32
    return %arg1, %c0_i32, %c0_i32_0 : i32, i32, i32
  }
  func.func @transform_3(%arg0: i32, %arg1: i32) -> (i32, i32, i32) {
    %c0_i32 = arith.constant 0 : i32
    %c0_i32_0 = arith.constant 0 : i32
    %c0_i32_1 = arith.constant 0 : i32
    return %arg1, %c0_i32, %c0_i32_0 : i32, i32, i32
  }
  func.func @transform_4(%arg0: i32, %arg1: i32) -> (i32, i32, i32) {
    %c0_i32 = arith.constant 0 : i32
    %c0_i32_0 = arith.constant 0 : i32
    %c0_i32_1 = arith.constant 0 : i32
    return %arg1, %c0_i32, %c0_i32_0 : i32, i32, i32
  }
  func.func @transform_5(%arg0: i32, %arg1: i32) -> (i32, i32, i32) {
    %c0_i32 = arith.constant 0 : i32
    %c0_i32_0 = arith.constant 0 : i32
    %c0_i32_1 = arith.constant 0 : i32
    return %arg1, %c0_i32, %c0_i32_0 : i32, i32, i32
  }
  func.func @transform_6(%arg0: i32, %arg1: i32) -> (i32, i32) {
    %c0_i32 = arith.constant 0 : i32
    %c0_i32_0 = arith.constant 0 : i32
    %c0_i32_1 = arith.constant 0 : i32
    return %c0_i32, %c0_i32_0 : i32, i32
  }
  func.func @transform_7(%arg0: i32, %arg1: i32) -> (i32, i32, i32) {
    %c0_i32 = arith.constant 0 : i32
    %c0_i32_0 = arith.constant 0 : i32
    %c0_i32_1 = arith.constant 0 : i32
    return %arg0, %c0_i32, %c0_i32_0 : i32, i32, i32
  }
}

</mosaic_0001>

<llo_original>
// kernel: ft_transformer_convs.1
$region0: #{ft_transformer_convs.1}
  #allocation0 [shape = 'u32[]', space=smem, size = 0x4, offset = 0x4, fixed_abs, tag = 'smem constant byte address 0x4 - core index']
  #allocation1 [shape = 'u32[144,128]{1,0:T(1,128)}', space=vmem, size = 0x12000, scoped, tag = 'internal scratch']
  %s0 = inlined_call_operand.vmem [shape: f32[2,16,64], index: 0, kind: input, shape index: {}]
  %s1 = inlined_call_operand.hbm [shape: bf16[3,64,192], index: 1, kind: input, shape index: {}]
  %s2 = inlined_call_operand.hbm [shape: bf16[3,64,64], index: 2, kind: input, shape index: {}]
  %s3 = inlined_call_operand.hbm [shape: bf16[3,64,64], index: 3, kind: input, shape index: {}]
  %s4 = inlined_call_operand.hbm [shape: bf16[3,64,64], index: 4, kind: input, shape index: {}]
  %s5 = inlined_call_operand.vmem [shape: f32[3,8,192], index: 5, kind: input, shape index: {}]
  %s6 = inlined_call_operand.vmem [shape: f32[2,64], index: 6, kind: input, shape index: {}]
  %s7 = inlined_call_operand.vmem [shape: f32[2,16,64], index: 7, kind: output, shape index: {}]
  %s8 = sld [smem:[#allocation0]]
  $region85: #{ft_transformer_convs.1} parent=0
    _
  %s10 = ssub.s32 1, %s8
  %s11 = scalar_select 0, %s10, %s8
  $region1: #{ft_transformer_convs.1} parent=0
    #allocation2 [shape = 'u8[65536]{0}', space=vmem, size = 0x10000, scoped, tag = 'input window, operand 1']
    #allocation3 [shape = 's32[2]{0}', space=sflag, size = 0x8, scoped, tag = 'scoped memory for ft_transformer_convs.1']
    #allocation4 [shape = 'u8[32768]{0}', space=vmem, size = 0x8000, scoped, tag = 'input window, operand 2']
    #allocation5 [shape = 's32[2]{0}', space=sflag, size = 0x8, scoped, tag = 'scoped memory for ft_transformer_convs.1']
    #allocation6 [shape = 'u8[32768]{0}', space=vmem, size = 0x8000, scoped, tag = 'input window, operand 3']
    #allocation7 [shape = 'u8[32768]{0}', space=vmem, size = 0x8000, scoped, tag = 'input window, operand 4']
    #allocation8 [shape = 's32[2]{0}', space=sflag, size = 0x8, scoped, tag = 'scoped memory for ft_transformer_convs.1']
    %12 = vsyncpa [#allocation3], 0
    %s13 = scalar_lea.sflag [#allocation3], 1
    %14 = vsyncpa %s13, 0
    %15 = vsyncpa [#allocation5], 0
    %s16 = scalar_lea.sflag [#allocation5], 1
    %17 = vsyncpa %s16, 0
    %18 = vsyncpa [#allocation8], 0
    %s19 = scalar_lea.sflag [#allocation8], 1
    %20 = vsyncpa %s19, 0
    loop: start=0, step=1, limit=8
    $region2: #{ft_transformer_convs.1} parent=1 // loop_pre_header
      _
    $region3: #{ft_transformer_convs.1} parent=1 // loop_header
      %s22 = sphi 0, %s26
      %p23 = scmp.ge.s32.totalorder %s22, 8
      %s29 = sphi 0, %s41
      %s30 = sphi 0, %s37
      %s31 = sphi 0, %s29
      %s32 = sphi 0, %s30
      %s33 = sphi 0, %s31
      %s34 = sphi 0, %s32
      %s44 = sphi 0, %s46
      %s47 = sphi 0, %s44
      %s48 = sphi 0, %s47
      %s64 = sphi 0, %s48
      %s70 = sphi 0, %s72
      %s73 = sphi 0, %s70
      %s74 = sphi 0, %s73
      %s90 = sphi 0, %s74
      %s96 = sphi 0, %s98
      %s99 = sphi 0, %s96
      %s100 = sphi 0, %s99
      %s116 = sphi 0, %s100
      %s122 = sphi 0, %s124
      %s125 = sphi 0, %s122
      %s126 = sphi 0, %s125
      %s142 = sphi 0, %s126
      %s148 = sphi 0, %s150
      %s151 = sphi 0, %s148
      %s152 = sphi 0, %s151
      %s168 = sphi 0, %s152
      %s174 = sphi 0, %s176
      %s177 = sphi 0, %s174
      %s178 = sphi 0, %s177
      %s194 = sphi 0, %s178
      %s198 = sphi 0, %s198
      %s200 = sphi 0, %s198
      %s201 = sphi 0, %s200
      %s215 = sphi 0, %s201
      %s221 = sphi 0, %s223
      %s224 = sphi 0, %s221
      %s225 = sphi 0, %s224
      %s241 = sphi 0, %s225
    $region4: #{ft_transformer_convs.1} parent=1 // loop_header_branch
      %25 = sbr.rel (%p23) target = $region8
    $region5: #{ft_transformer_convs.1} parent=1 // loop_body
      %s27 = ssub.s32 %s22, 1
      %s28 = ssub.s32 %s22, 2
      %s35 = sadd.s32 1, %s30
      %p36 = scmp.ge.s32.totalorder %s35, 3
      %s37 = scalar_select %p36, 0, %s35
      %s38 = sadd.s32 1, %s29
      %s39 = scalar_select %p36, %s38, %s29
      %p40 = scmp.ge.s32.totalorder %s39, 2
      %s41 = scalar_select %p40, 0, %s39
      %s42 = ssub.s32 %s29, %s41
      %p43 = scmp.eq.s32.totalorder %s42, 0
      %s45 = sadd.s32 %s44, 1
      %s46 = scalar_select %p43, %s44, %s45
      %p49 = pneg %p43
      %p50 = scmp.eq.s32.totalorder %s22, 5
      %p51 = por %p49, %p50
      %p52 = scmp.ne.s32.totalorder %s44, %s47
      %p53 = scmp.eq.s32.totalorder %s22, 0
      %p54 = por %p52, %p53
      %p55 = scmp.ne.s32.totalorder %s44, %s47
      %p56 = scmp.eq.s32.totalorder %s27, 5
      %p57 = por %p55, %p56
      %p58 = scmp.ne.s32.totalorder %s47, %s48
      %p59 = scmp.eq.s32.totalorder %s27, 0
      %p60 = por %p58, %p59
      %p61 = scmp.ne.s32.totalorder %s47, %s48
      %p62 = scmp.eq.s32.totalorder %s28, 5
      %p63 = por %p61, %p62
      %p65 = scmp.ne.s32.totalorder %s48, %s64
      %p66 = scmp.eq.s32.totalorder %s28, 0
      %p67 = por %p65, %p66
      %s68 = ssub.s32 %s30, %s37
      %p69 = scmp.eq.s32.totalorder %s68, 0
      %s71 = sadd.s32 %s70, 1
      %s72 = scalar_select %p69, %s70, %s71
      %p75 = pneg %p69
      %p76 = scmp.eq.s32.totalorder %s22, 5
      %p77 = por %p75, %p76
      %p78 = scmp.ne.s32.totalorder %s70, %s73
      %p79 = scmp.eq.s32.totalorder %s22, 0
      %p80 = por %p78, %p79
      %p81 = scmp.ne.s32.totalorder %s70, %s73
      %p82 = scmp.eq.s32.totalorder %s27, 5
      %p83 = por %p81, %p82
      %p84 = scmp.ne.s32.totalorder %s73, %s74
      %p85 = scmp.eq.s32.totalorder %s27, 0
      %p86 = por %p84, %p85
      %p87 = scmp.ne.s32.totalorder %s73, %s74
      %p88 = scmp.eq.s32.totalorder %s28, 5
      %p89 = por %p87, %p88
      %p91 = scmp.ne.s32.totalorder %s74, %s90
      %p92 = scmp.eq.s32.totalorder %s28, 0
      %p93 = por %p91, %p92
      %s94 = ssub.s32 %s30, %s37
      %p95 = scmp.eq.s32.totalorder %s94, 0
      %s97 = sadd.s32 %s96, 1
      %s98 = scalar_select %p95, %s96, %s97
      %p101 = pneg %p95
      %p102 = scmp.eq.s32.totalorder %s22, 5
      %p103 = por %p101, %p102
      %p104 = scmp.ne.s32.totalorder %s96, %s99
      %p105 = scmp.eq.s32.totalorder %s22, 0
      %p106 = por %p104, %p105
      %p107 = scmp.ne.s32.totalorder %s96, %s99
      %p108 = scmp.eq.s32.totalorder %s27, 5
      %p109 = por %p107, %p108
      %p110 = scmp.ne.s32.totalorder %s99, %s100
      %p111 = scmp.eq.s32.totalorder %s27, 0
      %p112 = por %p110, %p111
      %p113 = scmp.ne.s32.totalorder %s99, %s100
      %p114 = scmp.eq.s32.totalorder %s28, 5
      %p115 = por %p113, %p114
      %p117 = scmp.ne.s32.totalorder %s100, %s116
      %p118 = scmp.eq.s32.totalorder %s28, 0
      %p119 = por %p117, %p118
      %s120 = ssub.s32 %s30, %s37
      %p121 = scmp.eq.s32.totalorder %s120, 0
      %s123 = sadd.s32 %s122, 1
      %s124 = scalar_select %p121, %s122, %s123
      %p127 = pneg %p121
      %p128 = scmp.eq.s32.totalorder %s22, 5
      %p129 = por %p127, %p128
      %p130 = scmp.ne.s32.totalorder %s122, %s125
      %p131 = scmp.eq.s32.totalorder %s22, 0
      %p132 = por %p130, %p131
      %p133 = scmp.ne.s32.totalorder %s122, %s125
      %p134 = scmp.eq.s32.totalorder %s27, 5
      %p135 = por %p133, %p134
      %p136 = scmp.ne.s32.totalorder %s125, %s126
      %p137 = scmp.eq.s32.totalorder %s27, 0
      %p138 = por %p136, %p137
      %p139 = scmp.ne.s32.totalorder %s125, %s126
      %p140 = scmp.eq.s32.totalorder %s28, 5
      %p141 = por %p139, %p140
      %p143 = scmp.ne.s32.totalorder %s126, %s142
      %p144 = scmp.eq.s32.totalorder %s28, 0
      %p145 = por %p143, %p144
      %s146 = ssub.s32 %s30, %s37
      %p147 = scmp.eq.s32.totalorder %s146, 0
      %s149 = sadd.s32 %s148, 1
      %s150 = scalar_select %p147, %s148, %s149
      %p153 = pneg %p147
      %p154 = scmp.eq.s32.totalorder %s22, 5
      %p155 = por %p153, %p154
      %p156 = scmp.ne.s32.totalorder %s148, %s151
      %p157 = scmp.eq.s32.totalorder %s22, 0
      %p158 = por %p156, %p157
      %p159 = scmp.ne.s32.totalorder %s148, %s151
      %p160 = scmp.eq.s32.totalorder %s27, 5
      %p161 = por %p159, %p160
      %p162 = scmp.ne.s32.totalorder %s151, %s152
      %p163 = scmp.eq.s32.totalorder %s27, 0
      %p164 = por %p162, %p163
      %p165 = scmp.ne.s32.totalorder %s151, %s152
      %p166 = scmp.eq.s32.totalorder %s28, 5
      %p167 = por %p165, %p166
      %p169 = scmp.ne.s32.totalorder %s152, %s168
      %p170 = scmp.eq.s32.totalorder %s28, 0
      %p171 = por %p169, %p170
      %s172 = ssub.s32 %s30, %s37
      %p173 = scmp.eq.s32.totalorder %s172, 0
      %s175 = sadd.s32 %s174, 1
      %s176 = scalar_select %p173, %s174, %s175
      %p179 = pneg %p173
      %p180 = scmp.eq.s32.totalorder %s22, 5
      %p181 = por %p179, %p180
      %p182 = scmp.ne.s32.totalorder %s174, %s177
      %p183 = scmp.eq.s32.totalorder %s22, 0
      %p184 = por %p182, %p183
      %p185 = scmp.ne.s32.totalorder %s174, %s177
      %p186 = scmp.eq.s32.totalorder %s27, 5
      %p187 = por %p185, %p186
      %p188 = scmp.ne.s32.totalorder %s177, %s178
      %p189 = scmp.eq.s32.totalorder %s27, 0
      %p190 = por %p188, %p189
      %p191 = scmp.ne.s32.totalorder %s177, %s178
      %p192 = scmp.eq.s32.totalorder %s28, 5
      %p193 = por %p191, %p192
      %p195 = scmp.ne.s32.totalorder %s178, %s194
      %p196 = scmp.eq.s32.totalorder %s28, 0
      %p197 = por %p195, %p196
      %s199 = sadd.s32 %s198, 1
      %p202 = scmp.eq.s32.totalorder %s22, 5
      %p203 = scmp.ne.s32.totalorder %s198, %s200
      %p204 = scmp.eq.s32.totalorder %s22, 0
      %p205 = por %p203, %p204
      %p206 = scmp.ne.s32.totalorder %s198, %s200
      %p207 = scmp.eq.s32.totalorder %s27, 5
      %p208 = por %p206, %p207
      %p209 = scmp.ne.s32.totalorder %s200, %s201
      %p210 = scmp.eq.s32.totalorder %s27, 0
      %p211 = por %p209, %p210
      %p212 = scmp.ne.s32.totalorder %s200, %s201
      %p213 = scmp.eq.s32.totalorder %s28, 5
      %p214 = por %p212, %p213
      %p216 = scmp.ne.s32.totalorder %s201, %s215
      %p217 = scmp.eq.s32.totalorder %s28, 0
      %p218 = por %p216, %p217
      %s219 = ssub.s32 %s29, %s41
      %p220 = scmp.eq.s32.totalorder %s219, 0
      %s222 = sadd.s32 %s221, 1
      %s223 = scalar_select %p220, %s221, %s222
      %p226 = pneg %p220
      %p227 = scmp.eq.s32.totalorder %s22, 5
      %p228 = por %p226, %p227
      %p229 = scmp.ne.s32.totalorder %s221, %s224
      %p230 = scmp.eq.s32.totalorder %s22, 0
      %p231 = por %p229, %p230
      %p232 = scmp.ne.s32.totalorder %s221, %s224
      %p233 = scmp.eq.s32.totalorder %s27, 5
      %p234 = por %p232, %p233
      %p235 = scmp.ne.s32.totalorder %s224, %s225
      %p236 = scmp.eq.s32.totalorder %s27, 0
      %p237 = por %p235, %p236
      %p238 = scmp.ne.s32.totalorder %s224, %s225
      %p239 = scmp.eq.s32.totalorder %s28, 5
      %p240 = por %p238, %p239
      %p242 = scmp.ne.s32.totalorder %s225, %s241
      %p243 = scmp.eq.s32.totalorder %s28, 0
      %p244 = por %p242, %p243
      %p245 = scmp.le.s32.totalorder 1, %s22
      %p246 = scmp.lt.s32.totalorder %s22, 7
      %p247 = pnand %p245, %p246
      %p248 = pneg %p247
      // Predicated region
      $region9: #{ft_transformer_convs.1} parent=5 // pred_check
        _
      $region10: #{ft_transformer_convs.1} parent=5 // pred_check_branch
        %250 = sbr.rel (%p247) target = $region12
      $region11: #{ft_transformer_convs.1} parent=5 // pred_region
        %s251 = ssub.s32 %s22, 1
        // Predicated region
        $region13: #{ft_transformer_convs.1} parent=11 // pred_check
          %p252 = pneg %p211
        $region14: #{ft_transformer_convs.1} parent=11 // pred_check_branch
          %254 = sbr.rel (%p252) target = $region16
        $region15: #{ft_transformer_convs.1} parent=11 // pred_region
          _
        $region16: #{ft_transformer_convs.1} parent=11 // pred_fallthru
          _
      $region12: #{ft_transformer_convs.1} parent=5 // pred_fallthru
        _
      %p255 = scmp.lt.s32.totalorder %s22, 6
      // Predicated region
      $region17: #{ft_transformer_convs.1} parent=5 // pred_check
        %p256 = pneg %p255
      $region18: #{ft_transformer_convs.1} parent=5 // pred_check_branch
        %258 = sbr.rel (%p256) target = $region20
      $region19: #{ft_transformer_convs.1} parent=5 // pred_region
        // Predicated region
        $region21: #{ft_transformer_convs.1} parent=19 // pred_check
          %p259 = pneg %p54
        $region22: #{ft_transformer_convs.1} parent=19 // pred_check_branch
          %261 = sbr.rel (%p259) target = $region24
        $region23: #{ft_transformer_convs.1} parent=19 // pred_region
          %p262 = scmp.lt.s32.totalorder %s29, 1
          %s263 = scalar_select %p262, %s29, 1
          %s264 = smul.addr %s263, 2
          %s265 = smul.addr %s264, 8
          %s266 = scalar_lea.vmem %s0, %s265
        $region24: #{ft_transformer_convs.1} parent=19 // pred_fallthru
          _
        // Predicated region
        $region25: #{ft_transformer_convs.1} parent=19 // pred_check
          %p267 = pneg %p80
        $region26: #{ft_transformer_convs.1} parent=19 // pred_check_branch
          %269 = sbr.rel (%p267) target = $region28
        $region27: #{ft_transformer_convs.1} parent=19 // pred_region
          %s270 = sand.u32 %s70, 1
          %s271 = scalar_lea.sflag [#allocation3], %s270
          %s272 = sand.u32 %s70, 1
          %s273 = smul.addr %s272, 64
          %s274 = scalar_lea.vmem [#allocation2], %s273
          %s276 = ssub.s32 1024, 1024
          %277 = vsyncadd %s271, %s276
          %s278 = smul.addr %s30, 16
          %s279 = smul.addr %s278, 64
          %s280 = scalar_lea.hbm %s1, %s279
          %s281 = sshll.u32 %s274, 4
          %s282 = int_to_ptr.vmem [resolvable:$true] %s281
          %287 = dma.hbm_to_vmem [thread:$0]  %s280, 1024, %s282, %s271, 128, 128, 8
        $region28: #{ft_transformer_convs.1} parent=19 // pred_fallthru
          _
        // Predicated region
        $region29: #{ft_transformer_convs.1} parent=19 // pred_check
          %p288 = pneg %p106
        $region30: #{ft_transformer_convs.1} parent=19 // pred_check_branch
          %290 = sbr.rel (%p288) target = $region32
        $region31: #{ft_transformer_convs.1} parent=19 // pred_region
          %s291 = sand.u32 %s22, 1
          %s292 = scalar_lea.sflag [#allocation5], %s291
          %s293 = sand.u32 %s96, 1
          %s294 = smul.addr %s293, 32
          %s295 = scalar_lea.vmem [#allocation4], %s294
          %s297 = ssub.s32 512, 512
          %298 = vsyncadd %s292, %s297
          %s299 = smul.addr %s30, 8
          %s300 = smul.addr %s299, 64
          %s301 = scalar_lea.hbm %s2, %s300
          %s302 = sshll.u32 %s295, 4
          %s303 = int_to_ptr.vmem [resolvable:$true] %s302
          %308 = dma.hbm_to_vmem [thread:$0]  %s301, 512, %s303, %s292, 64, 64, 4
        $region32: #{ft_transformer_convs.1} parent=19 // pred_fallthru
          _
        // Predicated region
        $region33: #{ft_transformer_convs.1} parent=19 // pred_check
          %p309 = pneg %p132
        $region34: #{ft_transformer_convs.1} parent=19 // pred_check_branch
          %311 = sbr.rel (%p309) target = $region36
        $region35: #{ft_transformer_convs.1} parent=19 // pred_region
          %s312 = sand.u32 %s22, 1
          %s313 = scalar_lea.sflag [#allocation5], %s312
          %s314 = sand.u32 %s122, 1
          %s315 = smul.addr %s314, 32
          %s316 = scalar_lea.vmem [#allocation6], %s315
          %s318 = ssub.s32 512, 512
          %319 = vsyncadd %s313, %s318
          %s320 = smul.addr %s30, 8
          %s321 = smul.addr %s320, 64
          %s322 = scalar_lea.hbm %s3, %s321
          %s323 = sshll.u32 %s316, 4
          %s324 = int_to_ptr.vmem [resolvable:$true] %s323
          %329 = dma.hbm_to_vmem [thread:$0]  %s322, 512, %s324, %s313, 64, 64, 4
        $region36: #{ft_transformer_convs.1} parent=19 // pred_fallthru
          _
        // Predicated region
        $region37: #{ft_transformer_convs.1} parent=19 // pred_check
          %p330 = pneg %p158
        $region38: #{ft_transformer_convs.1} parent=19 // pred_check_branch
          %332 = sbr.rel (%p330) target = $region40
        $region39: #{ft_transformer_convs.1} parent=19 // pred_region
          %s333 = sand.u32 %s148, 1
          %s334 = scalar_lea.sflag [#allocation8], %s333
          %s335 = sand.u32 %s148, 1
          %s336 = smul.addr %s335, 32
          %s337 = scalar_lea.vmem [#allocation7], %s336
          %s339 = ssub.s32 512, 512
          %340 = vsyncadd %s334, %s339
          %s341 = smul.addr %s30, 8
          %s342 = smul.addr %s341, 64
          %s343 = scalar_lea.hbm %s4, %s342
          %s344 = sshll.u32 %s337, 4
          %s345 = int_to_ptr.vmem [resolvable:$true] %s344
          %350 = dma.hbm_to_vmem [thread:$0]  %s343, 512, %s345, %s334, 64, 64, 4
        $region40: #{ft_transformer_convs.1} parent=19 // pred_fallthru
          _
        // Predicated region
        $region41: #{ft_transformer_convs.1} parent=19 // pred_check
          %p351 = pneg %p184
        $region42: #{ft_transformer_convs.1} parent=19 // pred_check_branch
          %353 = sbr.rel (%p351) target = $region44
        $region43: #{ft_transformer_convs.1} parent=19 // pred_region
          %p354 = scmp.lt.s32.totalorder %s30, 2
          %s355 = scalar_select %p354, %s30, 2
          %s356 = smul.addr %s355, 2
          %s357 = smul.addr %s356, 8
          %s358 = scalar_lea.vmem %s5, %s357
        $region44: #{ft_transformer_convs.1} parent=19 // pred_fallthru
          _
      $region20: #{ft_transformer_convs.1} parent=5 // pred_fallthru
        _
      %p359 = scmp.le.s32.totalorder 1, %s22
      %p360 = scmp.lt.s32.totalorder %s22, 7
      %p361 = pnand %p359, %p360
      %p362 = pneg %p361
      // Predicated region
      $region45: #{ft_transformer_convs.1} parent=5 // pred_check
        _
      $region46: #{ft_transformer_convs.1} parent=5 // pred_check_branch
        %364 = sbr.rel (%p361) target = $region48
      $region47: #{ft_transformer_convs.1} parent=5 // pred_region
        %s365 = ssub.s32 %s22, 1
        %s366 = sand.u32 %s73, 1
        %s367 = scalar_lea.sflag [#allocation3], %s366
        %s368 = sand.u32 %s73, 1
        %s369 = smul.addr %s368, 64
        %s370 = scalar_lea.vmem [#allocation2], %s369
        // Predicated region
        $region49: #{ft_transformer_convs.1} parent=47 // pred_check
          %p371 = pneg %p86
        $region50: #{ft_transformer_convs.1} parent=47 // pred_check_branch
          %373 = sbr.rel (%p371) target = $region52
        $region51: #{ft_transformer_convs.1} parent=47 // pred_region
          %374 = dma.done %s367, 1024
        $region52: #{ft_transformer_convs.1} parent=47 // pred_fallthru
          _
        %s375 = sand.u32 %s27, 1
        %s376 = scalar_lea.sflag [#allocation5], %s375
        %s377 = sand.u32 %s99, 1
        %s378 = smul.addr %s377, 32
        %s379 = scalar_lea.vmem [#allocation4], %s378
        // Predicated region
        $region53: #{ft_transformer_convs.1} parent=47 // pred_check
          %p380 = pneg %p112
        $region54: #{ft_transformer_convs.1} parent=47 // pred_check_branch
          %382 = sbr.rel (%p380) target = $region56
        $region55: #{ft_transformer_convs.1} parent=47 // pred_region
          %383 = dma.done %s376, 512
        $region56: #{ft_transformer_convs.1} parent=47 // pred_fallthru
          _
        %s384 = sand.u32 %s27, 1
        %s385 = scalar_lea.sflag [#allocation5], %s384
        %s386 = sand.u32 %s125, 1
        %s387 = smul.addr %s386, 32
        %s388 = scalar_lea.vmem [#allocation6], %s387
        // Predicated region
        $region57: #{ft_transformer_convs.1} parent=47 // pred_check
          %p389 = pneg %p138
        $region58: #{ft_transformer_convs.1} parent=47 // pred_check_branch
          %391 = sbr.rel (%p389) target = $region60
        $region59: #{ft_transformer_convs.1} parent=47 // pred_region
          %392 = dma.done %s385, 512
        $region60: #{ft_transformer_convs.1} parent=47 // pred_fallthru
          _
        %s393 = sand.u32 %s151, 1
        %s394 = scalar_lea.sflag [#allocation8], %s393
        %s395 = sand.u32 %s151, 1
        %s396 = smul.addr %s395, 32
        %s397 = scalar_lea.vmem [#allocation7], %s396
        // Predicated region
        $region61: #{ft_transformer_convs.1} parent=47 // pred_check
          %p398 = pneg %p164
        $region62: #{ft_transformer_convs.1} parent=47 // pred_check_branch
          %400 = sbr.rel (%p398) target = $region64
        $region63: #{ft_transformer_convs.1} parent=47 // pred_region
          %401 = dma.done %s394, 512
        $region64: #{ft_transformer_convs.1} parent=47 // pred_fallthru
          _
        %p402 = scmp.lt.s32.totalorder %s31, 1
        %s403 = scalar_select %p402, %s31, 1
        %s404 = smul.addr %s403, 2
        %s405 = smul.addr %s404, 8
        %s406 = scalar_lea.vmem %s0, %s405
        %p407 = pneg %p60
        %p408 = pneg %p57
        %s409 = sand.u32 %s73, 1
        %s410 = scalar_lea.sflag [#allocation3], %s409
        %s411 = sand.u32 %s73, 1
        %s412 = smul.addr %s411, 64
        %s413 = scalar_lea.vmem [#allocation2], %s412
        %p414 = pneg %p86
        %p415 = pneg %p83
        %s416 = sand.u32 %s27, 1
        %s417 = scalar_lea.sflag [#allocation5], %s416
        %s418 = sand.u32 %s99, 1
        %s419 = smul.addr %s418, 32
        %s420 = scalar_lea.vmem [#allocation4], %s419
        %p421 = pneg %p112
        %p422 = pneg %p109
        %s423 = sand.u32 %s27, 1
        %s424 = scalar_lea.sflag [#allocation5], %s423
        %s425 = sand.u32 %s125, 1
        %s426 = smul.addr %s425, 32
        %s427 = scalar_lea.vmem [#allocation6], %s426
        %p428 = pneg %p138
        %p429 = pneg %p135
        %s430 = sand.u32 %s151, 1
        %s431 = scalar_lea.sflag [#allocation8], %s430
        %s432 = sand.u32 %s151, 1
        %s433 = smul.addr %s432, 32
        %s434 = scalar_lea.vmem [#allocation7], %s433
        %p435 = pneg %p164
        %p436 = pneg %p161
        %p437 = scmp.lt.s32.totalorder %s32, 2
        %s438 = scalar_select %p437, %s32, 2
        %s439 = smul.addr %s438, 2
        %s440 = smul.addr %s439, 8
        %s441 = scalar_lea.vmem %s5, %s440
        %p442 = pneg %p190
        %p443 = pneg %p187
        %p444 = pneg %p211
        %p445 = pneg %p208
        %p446 = pneg %p237
        %p447 = pneg %p234
        %p448 = scmp.lt.s32.totalorder %s31, 1
        %s449 = scalar_select %p448, %s31, 1
        %s450 = smul.addr %s449, 2
        %s451 = smul.addr %s450, 8
        %s452 = scalar_lea.vmem %s7, %s451
        %p453 = scmp.lt.s32.totalorder %s31, 1
        %s454 = scalar_select %p453, %s31, 1
        %s455 = smul.addr %s454, 2
        %s456 = smul.addr %s455, 8
        %s457 = scalar_lea.vmem %s0, %s456
        %p458 = scmp.lt.s32.totalorder %s32, 2
        %s459 = scalar_select %p458, %s32, 2
        %s460 = smul.addr %s459, 2
        %s461 = smul.addr %s460, 8
        %s462 = scalar_lea.vmem %s5, %s461
        %p463 = scmp.lt.s32.totalorder %s31, 1
        %s464 = scalar_select %p463, %s31, 1
        %s465 = smul.addr %s464, 2
        %s466 = smul.addr %s465, 8
        %s467 = scalar_lea.vmem %s7, %s466
        %p469 = scmp.eq.s32.totalorder %s32, 0
        // Predicated region
        $region65: #{ft_transformer_convs.1} parent=47 // pred_check
          %p470 = pneg %p469
        $region66: #{ft_transformer_convs.1} parent=47 // pred_check_branch
          %472 = sbr.rel (%p470) target = $region68
        $region67: #{ft_transformer_convs.1} parent=47 // pred_region
          %v473 = vld [vmem:[%s457] sm:$0xff]
          %v474 = vld [vmem:[%s457 + $0x8] sm:$0xff]
          %vm475 = vcmask 523264
          %476 = vst.msk [vmem:[%s467] sm:$0xff] %vm475, %v473
          %477 = vst.msk [vmem:[%s467 + $0x8] sm:$0xff] %vm475, %v474
        $region68: #{ft_transformer_convs.1} parent=47 // pred_fallthru
          _
        %v478 = vld [vmem:[%s467] sm:$0xff]
        %v479 = vld [vmem:[%s467 + $0x8] sm:$0xff]
        %v480 = vld [vmem:[%s370] sm:$0xff]
        %v481 = vld [vmem:[%s370 + $0x8] sm:$0xff]
        %v482 = vld [vmem:[%s370 + $0x10] sm:$0xff]
        %v483 = vld [vmem:[%s370 + $0x18] sm:$0xff]
        %v484 = vld [vmem:[%s370 + $0x20] sm:$0xff]
        %v485 = vld [vmem:[%s370 + $0x28] sm:$0xff]
        %v486 = vld [vmem:[%s370 + $0x30] sm:$0xff]
        %v487 = vld [vmem:[%s370 + $0x38] sm:$0xff]
        %v488 = vld [vmem:[%s379] sm:$0xf]
        %v489 = vld [vmem:[%s379 + $0x4] sm:$0xf]
        %v490 = vld [vmem:[%s379 + $0x8] sm:$0xf]
        %v491 = vld [vmem:[%s379 + $0xc] sm:$0xf]
        %v492 = vld [vmem:[%s379 + $0x10] sm:$0xf]
        %v493 = vld [vmem:[%s379 + $0x14] sm:$0xf]
        %v494 = vld [vmem:[%s379 + $0x18] sm:$0xf]
        %v495 = vld [vmem:[%s379 + $0x1c] sm:$0xf]
        %v496 = vld [vmem:[%s388] sm:$0xf]
        %v497 = vld [vmem:[%s388 + $0x4] sm:$0xf]
        %v498 = vld [vmem:[%s388 + $0x8] sm:$0xf]
        %v499 = vld [vmem:[%s388 + $0xc] sm:$0xf]
        %v500 = vld [vmem:[%s388 + $0x10] sm:$0xf]
        %v501 = vld [vmem:[%s388 + $0x14] sm:$0xf]
        %v502 = vld [vmem:[%s388 + $0x18] sm:$0xf]
        %v503 = vld [vmem:[%s388 + $0x1c] sm:$0xf]
        %v504 = vld [vmem:[%s397] sm:$0xf]
        %v505 = vld [vmem:[%s397 + $0x4] sm:$0xf]
        %v506 = vld [vmem:[%s397 + $0x8] sm:$0xf]
        %v507 = vld [vmem:[%s397 + $0xc] sm:$0xf]
        %v508 = vld [vmem:[%s397 + $0x10] sm:$0xf]
        %v509 = vld [vmem:[%s397 + $0x14] sm:$0xf]
        %v510 = vld [vmem:[%s397 + $0x18] sm:$0xf]
        %v511 = vld [vmem:[%s397 + $0x1c] sm:$0xf]
        %v512 = vld [vmem:[%s462] sm:$0xff]
        %v513 = vld [vmem:[%s462 + $0x8] sm:$0xff]
        %v514 = vpack.c.bf16 %v479, %v478
        %v515 = vlaneseq
        %v516 = vshrl.u32 %v515, 7
        %v517 = vsub.s32 0, %v516
        %v518 = vrot.slane %v512, %v517
        %v519 = vlaneseq
        %v520 = vshrl.u32 %v519, 7
        %v521 = vsub.s32 0, %v520
        %v522 = vrot.slane %v513, %v521
        %v531 = vunpack.c.l.b16 %v480
        %v532 = vunpack.c.h.b16 %v480
        %v533 = vunpack.c.l.b16 %v481
        %v534 = vunpack.c.h.b16 %v481
        %v535 = vunpack.c.l.b16 %v482
        %v536 = vunpack.c.h.b16 %v482
        %v537 = vunpack.c.l.b16 %v483
        %v538 = vunpack.c.h.b16 %v483
        %v539 = vunpack.c.l.b16 %v484
        %v540 = vunpack.c.h.b16 %v484
        %v541 = vunpack.c.l.b16 %v485
        %v542 = vunpack.c.h.b16 %v485
        %v543 = vunpack.c.l.b16 %v486
        %v544 = vunpack.c.h.b16 %v486
        %v545 = vunpack.c.l.b16 %v487
        %v546 = vunpack.c.h.b16 %v487
        %v547 = vpack.c.b16 %v533, %v531
        %v548 = vpack.c.b16 %v534, %v532
        %v549 = vpack.c.b16 %v537, %v535
        %v550 = vpack.c.b16 %v538, %v536
        %v551 = vpack.c.b16 %v541, %v539
        %v552 = vpack.c.b16 %v542, %v540
        %v553 = vpack.c.b16 %v545, %v543
        %v554 = vpack.c.b16 %v546, %v544
        %vm563 = vcmask 523264
        %v565 = vsel %vm563, %v514, 0
        %567 = vmatprep.subr.bf16.mxu0 %v548
        %568 = vmatpush1.bf16.msra.mxu0 %v547
        %569 = vmatprep.subr.bf16.mxu0 %v550
        %570 = vmatpush1.bf16.msra.mxu0 %v549
        %571 = vmatprep.subr.bf16.mxu0 %v552
        %572 = vmatpush1.bf16.msra.mxu0 %v551
        %573 = vmatprep.subr.bf16.mxu0 %v554
        %574 = vmatpush1.bf16.msra.mxu0 %v553
        %575 = vmatprep.subr.bf16.mxu0 0
        %576 = vmatpush1.bf16.msra.mxu0 0
        %577 = vmatprep.subr.bf16.mxu0 0
        %578 = vmatpush1.bf16.msra.mxu0 0
        %579 = vmatprep.subr.bf16.mxu0 0
        %580 = vmatpush1.bf16.msra.mxu0 0
        %581 = vmatprep.subr.bf16.mxu0 0
        %582 = vmatpush1.bf16.msra.mxu0 0
        %583 = vmatprep.subr.bf16.mxu0 0
        %584 = vmatpush1.bf16.msra.mxu0 0
        %585 = vmatprep.subr.bf16.mxu0 0
        %586 = vmatpush1.bf16.msra.mxu0 0
        %587 = vmatprep.subr.bf16.mxu0 0
        %588 = vmatpush1.bf16.msra.mxu0 0
        %589 = vmatprep.subr.bf16.mxu0 0
        %590 = vmatpush1.bf16.msra.mxu0 0
        %591 = vmatprep.subr.bf16.mxu0 0
        %592 = vmatpush1.bf16.msra.mxu0 0
        %593 = vmatprep.subr.bf16.mxu0 0
        %594 = vmatpush1.bf16.msra.mxu0 0
        %595 = vmatprep.subr.bf16.mxu0 0
        %596 = vmatpush1.bf16.msra.mxu0 0
        %597 = vmatprep.subr.bf16.mxu0 0
        %598 = vmatpush1.bf16.msra.mxu0 0
        %599 = vmatprep.mubr.bf16.mxu0 0
        %600 = vmatmul.mubr.bf16.gmra.mrb[0].mxu0 %v565
        %v601 = vpop.f32.mrb[0].mxu0
        %v602 = vadd.f32 %v518, %v601
        %v603 = vpop.f32.mrb[0].mxu0
        %v604 = vadd.f32 %v522, %v603
        %v605 = vpop.f32.mrb[0].mxu0
        %v606 = vadd.f32 %v518, %v605
        %v607 = vpop.f32.mrb[0].mxu0
        %v608 = vadd.f32 %v522, %v607
        %609 = vdwg.mxu0
        %v610 = vlaneseq
        %v611 = vand.u32 %v610, 127
        %vm612 = vcmp.lt.s32.totalorder %v611, 9
        %v613 = vsel %vm612, 0.0, -1e+30
        %v614 = vpack.c.bf16 %v606, %v602
        %v615 = vpack.c.bf16 %v608, %v604
        %617 = vrot.lane.b32.xlu0 %v614, 64
        %v618 = vpop.permute.xlu0 %617
        %vm619 = vcmask 64512
        %v621 = vsel %vm619, %v614, 0
        %v624 = vsel %vm619, %v618, 0
        %626 = vmatprep.subr.bf16.mxu0 0
        %627 = vmatpush1.bf16.xpose.msra.mxu0 %v624
        %628 = vmatprep.subr.bf16.mxu0 0
        %629 = vmatpush1.bf16.xpose.msra.mxu0 0
        %630 = vmatprep.subr.bf16.mxu0 0
        %631 = vmatpush1.bf16.xpose.msra.mxu0 0
        %632 = vmatprep.subr.bf16.mxu0 0
        %633 = vmatpush1.bf16.xpose.msra.mxu0 0
        %634 = vmatprep.subr.bf16.mxu0 0
        %635 = vmatpush1.bf16.xpose.msra.mxu0 0
        %636 = vmatprep.subr.bf16.mxu0 0
        %637 = vmatpush1.bf16.xpose.msra.mxu0 0
        %638 = vmatprep.subr.bf16.mxu0 0
        %639 = vmatpush1.bf16.xpose.msra.mxu0 0
        %640 = vmatprep.subr.bf16.mxu0 0
        %641 = vmatpush1.bf16.xpose.msra.mxu0 0
        %642 = vmatprep.subr.bf16.mxu0 0
        %643 = vmatpush1.bf16.xpose.msra.mxu0 0
        %644 = vmatprep.subr.bf16.mxu0 0
        %645 = vmatpush1.bf16.xpose.msra.mxu0 0
        %646 = vmatprep.subr.bf16.mxu0 0
        %647 = vmatpush1.bf16.xpose.msra.mxu0 0
        %648 = vmatprep.subr.bf16.mxu0 0
        %649 = vmatpush1.bf16.xpose.msra.mxu0 0
        %650 = vmatprep.subr.bf16.mxu0 0
        %651 = vmatpush1.bf16.xpose.msra.mxu0 0
        %652 = vmatprep.subr.bf16.mxu0 0
        %653 = vmatpush1.bf16.xpose.msra.mxu0 0
        %654 = vmatprep.subr.bf16.mxu0 0
        %655 = vmatpush1.bf16.xpose.msra.mxu0 0
        %656 = vmatprep.subr.bf16.mxu0 0
        %657 = vmatpush1.bf16.xpose.msra.mxu0 0
        %658 = vmatprep.mubr.bf16.mxu0 0
        %659 = vmatmul.mubr.bf16.gmra.mrb[0].mxu0 %v621
        %v660 = vpop.f32.mrb[0].mxu0
        %v661 = vadd.f32 %v613, %v660
        %v662 = vpop.f32.mrb[0].mxu0
        %v663 = vpop.f32.mrb[0].mxu0
        %v664 = vadd.f32 %v613, %v663
        %v665 = vpop.f32.mrb[0].mxu0
        %666 = vdwg.mxu0
        %vm667 = vcmask 130048
        %v668 = vsel %vm667, %v661, -inf
        %669 = vmax.xlane.f32.xlu0 %v668
        %v670 = vpop.xlane.xlu0 %669
        %v671 = vsel %vm667, %v664, -inf
        %672 = vmax.xlane.f32.xlu0 %v671
        %v673 = vpop.xlane.xlu0 %672
        %v674 = vsub.f32 %v661, %v670
        %v675 = vsub.f32 %v664, %v673
        %v676 = vmul.f32 %v674, 1.442695
        %v677 = vpow.pop %v676
        %v678 = vmul.f32 %v675, 1.442695
        %v679 = vpow.pop %v678
        %v680 = vsel %vm667, %v677, 0.0
        %681 = vadd.xlane.f32.xlu0 %v680
        %v682 = vpop.xlane.xlu0 %681
        %v683 = vsel %vm667, %v679, 0.0
        %684 = vadd.xlane.f32.xlu0 %v683
        %v685 = vpop.xlane.xlu0 %684
        %v686 = vrcp.pop %v682
        %v687 = vrcp.pop %v685
        %v688 = vmul.f32 %v677, %v686
        %v689 = vmul.f32 %v679, %v687
        %v690 = vpack.c.bf16 %v689, %v688
        %v692 = vsel %vm667, %v690, 0
        %694 = vmatprep.subr.bf16.mxu0 0
        %695 = vmatpush1.bf16.msra.mxu0 %v615
        %696 = vmatprep.subr.bf16.mxu0 0
        %697 = vmatpush1.bf16.msra.mxu0 0
        %698 = vmatprep.subr.bf16.mxu0 0
        %699 = vmatpush1.bf16.msra.mxu0 0
        %700 = vmatprep.subr.bf16.mxu0 0
        %701 = vmatpush1.bf16.msra.mxu0 0
        %702 = vmatprep.subr.bf16.mxu0 0
        %703 = vmatpush1.bf16.msra.mxu0 0
        %704 = vmatprep.subr.bf16.mxu0 0
        %705 = vmatpush1.bf16.msra.mxu0 0
        %706 = vmatprep.subr.bf16.mxu0 0
        %707 = vmatpush1.bf16.msra.mxu0 0
        %708 = vmatprep.subr.bf16.mxu0 0
        %709 = vmatpush1.bf16.msra.mxu0 0
        %710 = vmatprep.subr.bf16.mxu0 0
        %711 = vmatpush1.bf16.msra.mxu0 0
        %712 = vmatprep.subr.bf16.mxu0 0
        %713 = vmatpush1.bf16.msra.mxu0 0
        %714 = vmatprep.subr.bf16.mxu0 0
        %715 = vmatpush1.bf16.msra.mxu0 0
        %716 = vmatprep.subr.bf16.mxu0 0
        %717 = vmatpush1.bf16.msra.mxu0 0
        %718 = vmatprep.subr.bf16.mxu0 0
        %719 = vmatpush1.bf16.msra.mxu0 0
        %720 = vmatprep.subr.bf16.mxu0 0
        %721 = vmatpush1.bf16.msra.mxu0 0
        %722 = vmatprep.subr.bf16.mxu0 0
        %723 = vmatpush1.bf16.msra.mxu0 0
        %724 = vmatprep.subr.bf16.mxu0 0
        %725 = vmatpush1.bf16.msra.mxu0 0
        %726 = vmatprep.mubr.bf16.mxu0 0
        %727 = vmatmul.mubr.bf16.gmra.mrb[0].mxu0 %v692
        %v728 = vpop.f32.mrb[0].mxu0
        %v729 = vadd.f32 0.0, %v728
        %v730 = vpop.f32.mrb[0].mxu0
        %v731 = vpop.f32.mrb[0].mxu0
        %v732 = vadd.f32 0.0, %v731
        %v733 = vpop.f32.mrb[0].mxu0
        %734 = vdwg.mxu0
        %735 = vrot.lane.b32.xlu0 %v614, 120
        %v736 = vpop.permute.xlu0 %735
        %737 = vrot.lane.b32.xlu0 %v614, 56
        %v738 = vpop.permute.xlu0 %737
        %v740 = vsel %vm619, %v736, 0
        %v743 = vsel %vm619, %v738, 0
        %745 = vmatprep.subr.bf16.mxu0 0
        %746 = vmatpush1.bf16.xpose.msra.mxu0 %v743
        %747 = vmatprep.subr.bf16.mxu0 0
        %748 = vmatpush1.bf16.xpose.msra.mxu0 0
        %749 = vmatprep.subr.bf16.mxu0 0
        %750 = vmatpush1.bf16.xpose.msra.mxu0 0
        %751 = vmatprep.subr.bf16.mxu0 0
        %752 = vmatpush1.bf16.xpose.msra.mxu0 0
        %753 = vmatprep.subr.bf16.mxu0 0
        %754 = vmatpush1.bf16.xpose.msra.mxu0 0
        %755 = vmatprep.subr.bf16.mxu0 0
        %756 = vmatpush1.bf16.xpose.msra.mxu0 0
        %757 = vmatprep.subr.bf16.mxu0 0
        %758 = vmatpush1.bf16.xpose.msra.mxu0 0
        %759 = vmatprep.subr.bf16.mxu0 0
        %760 = vmatpush1.bf16.xpose.msra.mxu0 0
        %761 = vmatprep.subr.bf16.mxu0 0
        %762 = vmatpush1.bf16.xpose.msra.mxu0 0
        %763 = vmatprep.subr.bf16.mxu0 0
        %764 = vmatpush1.bf16.xpose.msra.mxu0 0
        %765 = vmatprep.subr.bf16.mxu0 0
        %766 = vmatpush1.bf16.xpose.msra.mxu0 0
        %767 = vmatprep.subr.bf16.mxu0 0
        %768 = vmatpush1.bf16.xpose.msra.mxu0 0
        %769 = vmatprep.subr.bf16.mxu0 0
        %770 = vmatpush1.bf16.xpose.msra.mxu0 0
        %771 = vmatprep.subr.bf16.mxu0 0
        %772 = vmatpush1.bf16.xpose.msra.mxu0 0
        %773 = vmatprep.subr.bf16.mxu0 0
        %774 = vmatpush1.bf16.xpose.msra.mxu0 0
        %775 = vmatprep.subr.bf16.mxu0 0
        %776 = vmatpush1.bf16.xpose.msra.mxu0 0
        %777 = vmatprep.mubr.bf16.mxu0 0
        %778 = vmatmul.mubr.bf16.gmra.mrb[0].mxu0 %v740
        %v779 = vpop.f32.mrb[0].mxu0
        %v780 = vadd.f32 %v613, %v779
        %v781 = vpop.f32.mrb[0].mxu0
        %v782 = vpop.f32.mrb[0].mxu0
        %v783 = vadd.f32 %v613, %v782
        %v784 = vpop.f32.mrb[0].mxu0
        %785 = vdwg.mxu0
        %v786 = vsel %vm667, %v780, -inf
        %787 = vmax.xlane.f32.xlu0 %v786
        %v788 = vpop.xlane.xlu0 %787
        %v789 = vsel %vm667, %v783, -inf
        %790 = vmax.xlane.f32.xlu0 %v789
        %v791 = vpop.xlane.xlu0 %790
        %v792 = vsub.f32 %v780, %v788
        %v793 = vsub.f32 %v783, %v791
        %v794 = vmul.f32 %v792, 1.442695
        %v795 = vpow.pop %v794
        %v796 = vmul.f32 %v793, 1.442695
        %v797 = vpow.pop %v796
        %v798 = vsel %vm667, %v795, 0.0
        %799 = vadd.xlane.f32.xlu0 %v798
        %v800 = vpop.xlane.xlu0 %799
        %v801 = vsel %vm667, %v797, 0.0
        %802 = vadd.xlane.f32.xlu0 %v801
        %v803 = vpop.xlane.xlu0 %802
        %v804 = vrcp.pop %v800
        %v805 = vrcp.pop %v803
        %v806 = vmul.f32 %v795, %v804
        %v807 = vmul.f32 %v797, %v805
        %v808 = vpack.c.bf16 %v807, %v806
        %810 = vrot.lane.b32.xlu0 %v615, 120
        %v811 = vpop.permute.xlu0 %810
        %v814 = vsel %vm667, %v808, 0
        %816 = vmatprep.subr.bf16.mxu0 0
        %817 = vmatpush1.bf16.msra.mxu0 %v811
        %818 = vmatprep.subr.bf16.mxu0 0
        %819 = vmatpush1.bf16.msra.mxu0 0
        %820 = vmatprep.subr.bf16.mxu0 0
        %821 = vmatpush1.bf16.msra.mxu0 0
        %822 = vmatprep.subr.bf16.mxu0 0
        %823 = vmatpush1.bf16.msra.mxu0 0
        %824 = vmatprep.subr.bf16.mxu0 0
        %825 = vmatpush1.bf16.msra.mxu0 0
        %826 = vmatprep.subr.bf16.mxu0 0
        %827 = vmatpush1.bf16.msra.mxu0 0
        %828 = vmatprep.subr.bf16.mxu0 0
        %829 = vmatpush1.bf16.msra.mxu0 0
        %830 = vmatprep.subr.bf16.mxu0 0
        %831 = vmatpush1.bf16.msra.mxu0 0
        %832 = vmatprep.subr.bf16.mxu0 0
        %833 = vmatpush1.bf16.msra.mxu0 0
        %834 = vmatprep.subr.bf16.mxu0 0
        %835 = vmatpush1.bf16.msra.mxu0 0
        %836 = vmatprep.subr.bf16.mxu0 0
        %837 = vmatpush1.bf16.msra.mxu0 0
        %838 = vmatprep.subr.bf16.mxu0 0
        %839 = vmatpush1.bf16.msra.mxu0 0
        %840 = vmatprep.subr.bf16.mxu0 0
        %841 = vmatpush1.bf16.msra.mxu0 0
        %842 = vmatprep.subr.bf16.mxu0 0
        %843 = vmatpush1.bf16.msra.mxu0 0
        %844 = vmatprep.subr.bf16.mxu0 0
        %845 = vmatpush1.bf16.msra.mxu0 0
        %846 = vmatprep.subr.bf16.mxu0 0
        %847 = vmatpush1.bf16.msra.mxu0 0
        %848 = vmatprep.mubr.bf16.mxu0 0
        %849 = vmatmul.mubr.bf16.gmra.mrb[0].mxu0 %v814
        %v850 = vpop.f32.mrb[0].mxu0
        %v851 = vadd.f32 0.0, %v850
        %v852 = vpop.f32.mrb[0].mxu0
        %v853 = vpop.f32.mrb[0].mxu0
        %v854 = vadd.f32 0.0, %v853
        %v855 = vpop.f32.mrb[0].mxu0
        %856 = vdwg.mxu0
        %857 = vrot.lane.b32.xlu0 %v614, 112
        %v858 = vpop.permute.xlu0 %857
        %859 = vrot.lane.b32.xlu0 %v614, 48
        %v860 = vpop.permute.xlu0 %859
        %v862 = vsel %vm619, %v858, 0
        %v865 = vsel %vm619, %v860, 0
        %867 = vmatprep.subr.bf16.mxu0 0
        %868 = vmatpush1.bf16.xpose.msra.mxu0 %v865
        %869 = vmatprep.subr.bf16.mxu0 0
        %870 = vmatpush1.bf16.xpose.msra.mxu0 0
        %871 = vmatprep.subr.bf16.mxu0 0
        %872 = vmatpush1.bf16.xpose.msra.mxu0 0
        %873 = vmatprep.subr.bf16.mxu0 0
        %874 = vmatpush1.bf16.xpose.msra.mxu0 0
        %875 = vmatprep.subr.bf16.mxu0 0
        %876 = vmatpush1.bf16.xpose.msra.mxu0 0
        %877 = vmatprep.subr.bf16.mxu0 0
        %878 = vmatpush1.bf16.xpose.msra.mxu0 0
        %879 = vmatprep.subr.bf16.mxu0 0
        %880 = vmatpush1.bf16.xpose.msra.mxu0 0
        %881 = vmatprep.subr.bf16.mxu0 0
        %882 = vmatpush1.bf16.xpose.msra.mxu0 0
        %883 = vmatprep.subr.bf16.mxu0 0
        %884 = vmatpush1.bf16.xpose.msra.mxu0 0
        %885 = vmatprep.subr.bf16.mxu0 0
        %886 = vmatpush1.bf16.xpose.msra.mxu0 0
        %887 = vmatprep.subr.bf16.mxu0 0
        %888 = vmatpush1.bf16.xpose.msra.mxu0 0
        %889 = vmatprep.subr.bf16.mxu0 0
        %890 = vmatpush1.bf16.xpose.msra.mxu0 0
        %891 = vmatprep.subr.bf16.mxu0 0
        %892 = vmatpush1.bf16.xpose.msra.mxu0 0
        %893 = vmatprep.subr.bf16.mxu0 0
        %894 = vmatpush1.bf16.xpose.msra.mxu0 0
        %895 = vmatprep.subr.bf16.mxu0 0
        %896 = vmatpush1.bf16.xpose.msra.mxu0 0
        %897 = vmatprep.subr.bf16.mxu0 0
        %898 = vmatpush1.bf16.xpose.msra.mxu0 0
        %899 = vmatprep.mubr.bf16.mxu0 0
        %900 = vmatmul.mubr.bf16.gmra.mrb[0].mxu0 %v862
        %v901 = vpop.f32.mrb[0].mxu0
        %v902 = vadd.f32 %v613, %v901
        %v903 = vpop.f32.mrb[0].mxu0
        %v904 = vpop.f32.mrb[0].mxu0
        %v905 = vadd.f32 %v613, %v904
        %v906 = vpop.f32.mrb[0].mxu0
        %907 = vdwg.mxu0
        %v908 = vsel %vm667, %v902, -inf
        %909 = vmax.xlane.f32.xlu0 %v908
        %v910 = vpop.xlane.xlu0 %909
        %v911 = vsel %vm667, %v905, -inf
        %912 = vmax.xlane.f32.xlu0 %v911
        %v913 = vpop.xlane.xlu0 %912
        %v914 = vsub.f32 %v902, %v910
        %v915 = vsub.f32 %v905, %v913
        %v916 = vmul.f32 %v914, 1.442695
        %v917 = vpow.pop %v916
        %v918 = vmul.f32 %v915, 1.442695
        %v919 = vpow.pop %v918
        %v920 = vsel %vm667, %v917, 0.0
        %921 = vadd.xlane.f32.xlu0 %v920
        %v922 = vpop.xlane.xlu0 %921
        %v923 = vsel %vm667, %v919, 0.0
        %924 = vadd.xlane.f32.xlu0 %v923
        %v925 = vpop.xlane.xlu0 %924
        %v926 = vrcp.pop %v922
        %v927 = vrcp.pop %v925
        %v928 = vmul.f32 %v917, %v926
        %v929 = vmul.f32 %v919, %v927
        %v930 = vpack.c.bf16 %v929, %v928
        %931 = vrot.lane.b32.xlu0 %v615, 112
        %v932 = vpop.permute.xlu0 %931
        %v935 = vsel %vm667, %v930, 0
        %937 = vmatprep.subr.bf16.mxu0 0
        %938 = vmatpush1.bf16.msra.mxu0 %v932
        %939 = vmatprep.subr.bf16.mxu0 0
        %940 = vmatpush1.bf16.msra.mxu0 0
        %941 = vmatprep.subr.bf16.mxu0 0
        %942 = vmatpush1.bf16.msra.mxu0 0
        %943 = vmatprep.subr.bf16.mxu0 0
        %944 = vmatpush1.bf16.msra.mxu0 0
        %945 = vmatprep.subr.bf16.mxu0 0
        %946 = vmatpush1.bf16.msra.mxu0 0
        %947 = vmatprep.subr.bf16.mxu0 0
        %948 = vmatpush1.bf16.msra.mxu0 0
        %949 = vmatprep.subr.bf16.mxu0 0
        %950 = vmatpush1.bf16.msra.mxu0 0
        %951 = vmatprep.subr.bf16.mxu0 0
        %952 = vmatpush1.bf16.msra.mxu0 0
        %953 = vmatprep.subr.bf16.mxu0 0
        %954 = vmatpush1.bf16.msra.mxu0 0
        %955 = vmatprep.subr.bf16.mxu0 0
        %956 = vmatpush1.bf16.msra.mxu0 0
        %957 = vmatprep.subr.bf16.mxu0 0
        %958 = vmatpush1.bf16.msra.mxu0 0
        %959 = vmatprep.subr.bf16.mxu0 0
        %960 = vmatpush1.bf16.msra.mxu0 0
        %961 = vmatprep.subr.bf16.mxu0 0
        %962 = vmatpush1.bf16.msra.mxu0 0
        %963 = vmatprep.subr.bf16.mxu0 0
        %964 = vmatpush1.bf16.msra.mxu0 0
        %965 = vmatprep.subr.bf16.mxu0 0
        %966 = vmatpush1.bf16.msra.mxu0 0
        %967 = vmatprep.subr.bf16.mxu0 0
        %968 = vmatpush1.bf16.msra.mxu0 0
        %969 = vmatprep.mubr.bf16.mxu0 0
        %970 = vmatmul.mubr.bf16.gmra.mrb[0].mxu0 %v935
        %v971 = vpop.f32.mrb[0].mxu0
        %v972 = vadd.f32 0.0, %v971
        %v973 = vpop.f32.mrb[0].mxu0
        %v974 = vpop.f32.mrb[0].mxu0
        %v975 = vadd.f32 0.0, %v974
        %v976 = vpop.f32.mrb[0].mxu0
        %977 = vdwg.mxu0
        %978 = vrot.lane.b32.xlu0 %v614, 104
        %v979 = vpop.permute.xlu0 %978
        %980 = vrot.lane.b32.xlu0 %v614, 40
        %v981 = vpop.permute.xlu0 %980
        %v983 = vsel %vm619, %v979, 0
        %v986 = vsel %vm619, %v981, 0
        %988 = vmatprep.subr.bf16.mxu0 0
        %989 = vmatpush1.bf16.xpose.msra.mxu0 %v986
        %990 = vmatprep.subr.bf16.mxu0 0
        %991 = vmatpush1.bf16.xpose.msra.mxu0 0
        %992 = vmatprep.subr.bf16.mxu0 0
        %993 = vmatpush1.bf16.xpose.msra.mxu0 0
        %994 = vmatprep.subr.bf16.mxu0 0
        %995 = vmatpush1.bf16.xpose.msra.mxu0 0
        %996 = vmatprep.subr.bf16.mxu0 0
        %997 = vmatpush1.bf16.xpose.msra.mxu0 0
        %998 = vmatprep.subr.bf16.mxu0 0
        %999 = vmatpush1.bf16.xpose.msra.mxu0 0
        %1000 = vmatprep.subr.bf16.mxu0 0
        %1001 = vmatpush1.bf16.xpose.msra.mxu0 0
        %1002 = vmatprep.subr.bf16.mxu0 0
        %1003 = vmatpush1.bf16.xpose.msra.mxu0 0
        %1004 = vmatprep.subr.bf16.mxu0 0
        %1005 = vmatpush1.bf16.xpose.msra.mxu0 0
        %1006 = vmatprep.subr.bf16.mxu0 0
        %1007 = vmatpush1.bf16.xpose.msra.mxu0 0
        %1008 = vmatprep.subr.bf16.mxu0 0
        %1009 = vmatpush1.bf16.xpose.msra.mxu0 0
        %1010 = vmatprep.subr.bf16.mxu0 0
        %1011 = vmatpush1.bf16.xpose.msra.mxu0 0
        %1012 = vmatprep.subr.bf16.mxu0 0
        %1013 = vmatpush1.bf16.xpose.msra.mxu0 0
        %1014 = vmatprep.subr.bf16.mxu0 0
        %1015 = vmatpush1.bf16.xpose.msra.mxu0 0
        %1016 = vmatprep.subr.bf16.mxu0 0
        %1017 = vmatpush1.bf16.xpose.msra.mxu0 0
        %1018 = vmatprep.subr.bf16.mxu0 0
        %1019 = vmatpush1.bf16.xpose.msra.mxu0 0
        %1020 = vmatprep.mubr.bf16.mxu0 0
        %1021 = vmatmul.mubr.bf16.gmra.mrb[0].mxu0 %v983
        %v1022 = vpop.f32.mrb[0].mxu0
        %v1023 = vadd.f32 %v613, %v1022
        %v1024 = vpop.f32.mrb[0].mxu0
        %v1025 = vpop.f32.mrb[0].mxu0
        %v1026 = vadd.f32 %v613, %v1025
        %v1027 = vpop.f32.mrb[0].mxu0
        %1028 = vdwg.mxu0
        %v1029 = vsel %vm667, %v1023, -inf
        %1030 = vmax.xlane.f32.xlu0 %v1029
        %v1031 = vpop.xlane.xlu0 %1030
        %v1032 = vsel %vm667, %v1026, -inf
        %1033 = vmax.xlane.f32.xlu0 %v1032
        %v1034 = vpop.xlane.xlu0 %1033
        %v1035 = vsub.f32 %v1023, %v1031
        %v1036 = vsub.f32 %v1026, %v1034
        %v1037 = vmul.f32 %v1035, 1.442695
        %v1038 = vpow.pop %v1037
        %v1039 = vmul.f32 %v1036, 1.442695
        %v1040 = vpow.pop %v1039
        %v1041 = vsel %vm667, %v1038, 0.0
        %1042 = vadd.xlane.f32.xlu0 %v1041
        %v1043 = vpop.xlane.xlu0 %1042
        %v1044 = vsel %vm667, %v1040, 0.0
        %1045 = vadd.xlane.f32.xlu0 %v1044
        %v1046 = vpop.xlane.xlu0 %1045
        %v1047 = vrcp.pop %v1043
        %v1048 = vrcp.pop %v1046
        %v1049 = vmul.f32 %v1038, %v1047
        %v1050 = vmul.f32 %v1040, %v1048
        %v1051 = vpack.c.bf16 %v1050, %v1049
        %1052 = vrot.lane.b32.xlu0 %v615, 104
        %v1053 = vpop.permute.xlu0 %1052
        %v1056 = vsel %vm667, %v1051, 0
        %1058 = vmatprep.subr.bf16.mxu0 0
        %1059 = vmatpush1.bf16.msra.mxu0 %v1053
        %1060 = vmatprep.subr.bf16.mxu0 0
        %1061 = vmatpush1.bf16.msra.mxu0 0
        %1062 = vmatprep.subr.bf16.mxu0 0
        %1063 = vmatpush1.bf16.msra.mxu0 0
        %1064 = vmatprep.subr.bf16.mxu0 0
        %1065 = vmatpush1.bf16.msra.mxu0 0
        %1066 = vmatprep.subr.bf16.mxu0 0
        %1067 = vmatpush1.bf16.msra.mxu0 0
        %1068 = vmatprep.subr.bf16.mxu0 0
        %1069 = vmatpush1.bf16.msra.mxu0 0
        %1070 = vmatprep.subr.bf16.mxu0 0
        %1071 = vmatpush1.bf16.msra.mxu0 0
        %1072 = vmatprep.subr.bf16.mxu0 0
        %1073 = vmatpush1.bf16.msra.mxu0 0
        %1074 = vmatprep.subr.bf16.mxu0 0
        %1075 = vmatpush1.bf16.msra.mxu0 0
        %1076 = vmatprep.subr.bf16.mxu0 0
        %1077 = vmatpush1.bf16.msra.mxu0 0
        %1078 = vmatprep.subr.bf16.mxu0 0
        %1079 = vmatpush1.bf16.msra.mxu0 0
        %1080 = vmatprep.subr.bf16.mxu0 0
        %1081 = vmatpush1.bf16.msra.mxu0 0
        %1082 = vmatprep.subr.bf16.mxu0 0
        %1083 = vmatpush1.bf16.msra.mxu0 0
        %1084 = vmatprep.subr.bf16.mxu0 0
        %1085 = vmatpush1.bf16.msra.mxu0 0
        %1086 = vmatprep.subr.bf16.mxu0 0
        %1087 = vmatpush1.bf16.msra.mxu0 0
        %1088 = vmatprep.subr.bf16.mxu0 0
        %1089 = vmatpush1.bf16.msra.mxu0 0
        %1090 = vmatprep.mubr.bf16.mxu0 0
        %1091 = vmatmul.mubr.bf16.gmra.mrb[0].mxu0 %v1056
        %v1092 = vpop.f32.mrb[0].mxu0
        %v1093 = vadd.f32 0.0, %v1092
        %v1094 = vpop.f32.mrb[0].mxu0
        %v1095 = vpop.f32.mrb[0].mxu0
        %v1096 = vadd.f32 0.0, %v1095
        %v1097 = vpop.f32.mrb[0].mxu0
        %1098 = vdwg.mxu0
        %1099 = vrot.lane.b32.xlu0 %v614, 96
        %v1100 = vpop.permute.xlu0 %1099
        %1101 = vrot.lane.b32.xlu0 %v614, 32
        %v1102 = vpop.permute.xlu0 %1101
        %v1104 = vsel %vm619, %v1100, 0
        %v1107 = vsel %vm619, %v1102, 0
        %1109 = vmatprep.subr.bf16.mxu0 0
        %1110 = vmatpush1.bf16.xpose.msra.mxu0 %v1107
        %1111 = vmatprep.subr.bf16.mxu0 0
        %1112 = vmatpush1.bf16.xpose.msra.mxu0 0
        %1113 = vmatprep.subr.bf16.mxu0 0
        %1114 = vmatpush1.bf16.xpose.msra.mxu0 0
        %1115 = vmatprep.subr.bf16.mxu0 0
        %1116 = vmatpush1.bf16.xpose.msra.mxu0 0
        %1117 = vmatprep.subr.bf16.mxu0 0
        %1118 = vmatpush1.bf16.xpose.msra.mxu0 0
        %1119 = vmatprep.subr.bf16.mxu0 0
        %1120 = vmatpush1.bf16.xpose.msra.mxu0 0
        %1121 = vmatprep.subr.bf16.mxu0 0
        %1122 = vmatpush1.bf16.xpose.msra.mxu0 0
        %1123 = vmatprep.subr.bf16.mxu0 0
        %1124 = vmatpush1.bf16.xpose.msra.mxu0 0
        %1125 = vmatprep.subr.bf16.mxu0 0
        %1126 = vmatpush1.bf16.xpose.msra.mxu0 0
        %1127 = vmatprep.subr.bf16.mxu0 0
        %1128 = vmatpush1.bf16.xpose.msra.mxu0 0
        %1129 = vmatprep.subr.bf16.mxu0 0
        %1130 = vmatpush1.bf16.xpose.msra.mxu0 0
        %1131 = vmatprep.subr.bf16.mxu0 0
        %1132 = vmatpush1.bf16.xpose.msra.mxu0 0
        %1133 = vmatprep.subr.bf16.mxu0 0
        %1134 = vmatpush1.bf16.xpose.msra.mxu0 0
        %1135 = vmatprep.subr.bf16.mxu0 0
        %1136 = vmatpush1.bf16.xpose.msra.mxu0 0
        %1137 = vmatprep.subr.bf16.mxu0 0
        %1138 = vmatpush1.bf16.xpose.msra.mxu0 0
        %1139 = vmatprep.subr.bf16.mxu0 0
        %1140 = vmatpush1.bf16.xpose.msra.mxu0 0
        %1141 = vmatprep.mubr.bf16.mxu0 0
        %1142 = vmatmul.mubr.bf16.gmra.mrb[0].mxu0 %v1104
        %v1143 = vpop.f32.mrb[0].mxu0
        %v1144 = vadd.f32 %v613, %v1143
        %v1145 = vpop.f32.mrb[0].mxu0
        %v1146 = vpop.f32.mrb[0].mxu0
        %v1147 = vadd.f32 %v613, %v1146
        %v1148 = vpop.f32.mrb[0].mxu0
        %1149 = vdwg.mxu0
        %v1150 = vsel %vm667, %v1144, -inf
        %1151 = vmax.xlane.f32.xlu0 %v1150
        %v1152 = vpop.xlane.xlu0 %1151
        %v1153 = vsel %vm667, %v1147, -inf
        %1154 = vmax.xlane.f32.xlu0 %v1153
        %v1155 = vpop.xlane.xlu0 %1154
        %v1156 = vsub.f32 %v1144, %v1152
        %v1157 = vsub.f32 %v1147, %v1155
        %v1158 = vmul.f32 %v1156, 1.442695
        %v1159 = vpow.pop %v1158
        %v1160 = vmul.f32 %v1157, 1.442695
        %v1161 = vpow.pop %v1160
        %v1162 = vsel %vm667, %v1159, 0.0
        %1163 = vadd.xlane.f32.xlu0 %v1162
        %v1164 = vpop.xlane.xlu0 %1163
        %v1165 = vsel %vm667, %v1161, 0.0
        %1166 = vadd.xlane.f32.xlu0 %v1165
        %v1167 = vpop.xlane.xlu0 %1166
        %v1168 = vrcp.pop %v1164
        %v1169 = vrcp.pop %v1167
        %v1170 = vmul.f32 %v1159, %v1168
        %v1171 = vmul.f32 %v1161, %v1169
        %v1172 = vpack.c.bf16 %v1171, %v1170
        %1173 = vrot.lane.b32.xlu0 %v615, 96
        %v1174 = vpop.permute.xlu0 %1173
        %v1177 = vsel %vm667, %v1172, 0
        %1179 = vmatprep.subr.bf16.mxu0 0
        %1180 = vmatpush1.bf16.msra.mxu0 %v1174
        %1181 = vmatprep.subr.bf16.mxu0 0
        %1182 = vmatpush1.bf16.msra.mxu0 0
        %1183 = vmatprep.subr.bf16.mxu0 0
        %1184 = vmatpush1.bf16.msra.mxu0 0
        %1185 = vmatprep.subr.bf16.mxu0 0
        %1186 = vmatpush1.bf16.msra.mxu0 0
        %1187 = vmatprep.subr.bf16.mxu0 0
        %1188 = vmatpush1.bf16.msra.mxu0 0
        %1189 = vmatprep.subr.bf16.mxu0 0
        %1190 = vmatpush1.bf16.msra.mxu0 0
        %1191 = vmatprep.subr.bf16.mxu0 0
        %1192 = vmatpush1.bf16.msra.mxu0 0
        %1193 = vmatprep.subr.bf16.mxu0 0
        %1194 = vmatpush1.bf16.msra.mxu0 0
        %1195 = vmatprep.subr.bf16.mxu0 0
        %1196 = vmatpush1.bf16.msra.mxu0 0
        %1197 = vmatprep.subr.bf16.mxu0 0
        %1198 = vmatpush1.bf16.msra.mxu0 0
        %1199 = vmatprep.subr.bf16.mxu0 0
        %1200 = vmatpush1.bf16.msra.mxu0 0
        %1201 = vmatprep.subr.bf16.mxu0 0
        %1202 = vmatpush1.bf16.msra.mxu0 0
        %1203 = vmatprep.subr.bf16.mxu0 0
        %1204 = vmatpush1.bf16.msra.mxu0 0
        %1205 = vmatprep.subr.bf16.mxu0 0
        %1206 = vmatpush1.bf16.msra.mxu0 0
        %1207 = vmatprep.subr.bf16.mxu0 0
        %1208 = vmatpush1.bf16.msra.mxu0 0
        %1209 = vmatprep.subr.bf16.mxu0 0
        %1210 = vmatpush1.bf16.msra.mxu0 0
        %1211 = vmatprep.mubr.bf16.mxu0 0
        %1212 = vmatmul.mubr.bf16.gmra.mrb[0].mxu0 %v1177
        %v1213 = vpop.f32.mrb[0].mxu0
        %v1214 = vadd.f32 0.0, %v1213
        %v1215 = vpop.f32.mrb[0].mxu0
        %v1216 = vpop.f32.mrb[0].mxu0
        %v1217 = vadd.f32 0.0, %v1216
        %v1218 = vpop.f32.mrb[0].mxu0
        %1219 = vdwg.mxu0
        %1220 = vrot.lane.b32.xlu0 %v614, 88
        %v1221 = vpop.permute.xlu0 %1220
        %1222 = vrot.lane.b32.xlu0 %v614, 24
        %v1223 = vpop.permute.xlu0 %1222
        %v1225 = vsel %vm619, %v1221, 0
        %v1228 = vsel %vm619, %v1223, 0
        %1230 = vmatprep.subr.bf16.mxu0 0
        %1231 = vmatpush1.bf16.xpose.msra.mxu0 %v1228
        %1232 = vmatprep.subr.bf16.mxu0 0
        %1233 = vmatpush1.bf16.xpose.msra.mxu0 0
        %1234 = vmatprep.subr.bf16.mxu0 0
        %1235 = vmatpush1.bf16.xpose.msra.mxu0 0
        %1236 = vmatprep.subr.bf16.mxu0 0
        %1237 = vmatpush1.bf16.xpose.msra.mxu0 0
        %1238 = vmatprep.subr.bf16.mxu0 0
        %1239 = vmatpush1.bf16.xpose.msra.mxu0 0
        %1240 = vmatprep.subr.bf16.mxu0 0
        %1241 = vmatpush1.bf16.xpose.msra.mxu0 0
        %1242 = vmatprep.subr.bf16.mxu0 0
        %1243 = vmatpush1.bf16.xpose.msra.mxu0 0
        %1244 = vmatprep.subr.bf16.mxu0 0
        %1245 = vmatpush1.bf16.xpose.msra.mxu0 0
        %1246 = vmatprep.subr.bf16.mxu0 0
        %1247 = vmatpush1.bf16.xpose.msra.mxu0 0
        %1248 = vmatprep.subr.bf16.mxu0 0
        %1249 = vmatpush1.bf16.xpose.msra.mxu0 0
        %1250 = vmatprep.subr.bf16.mxu0 0
        %1251 = vmatpush1.bf16.xpose.msra.mxu0 0
        %1252 = vmatprep.subr.bf16.mxu0 0
        %1253 = vmatpush1.bf16.xpose.msra.mxu0 0
        %1254 = vmatprep.subr.bf16.mxu0 0
        %1255 = vmatpush1.bf16.xpose.msra.mxu0 0
        %1256 = vmatprep.subr.bf16.mxu0 0
        %1257 = vmatpush1.bf16.xpose.msra.mxu0 0
        %1258 = vmatprep.subr.bf16.mxu0 0
        %1259 = vmatpush1.bf16.xpose.msra.mxu0 0
        %1260 = vmatprep.subr.bf16.mxu0 0
        %1261 = vmatpush1.bf16.xpose.msra.mxu0 0
        %1262 = vmatprep.mubr.bf16.mxu0 0
        %1263 = vmatmul.mubr.bf16.gmra.mrb[0].mxu0 %v1225
        %v1264 = vpop.f32.mrb[0].mxu0
        %v1265 = vadd.f32 %v613, %v1264
        %v1266 = vpop.f32.mrb[0].mxu0
        %v1267 = vpop.f32.mrb[0].mxu0
        %v1268 = vadd.f32 %v613, %v1267
        %v1269 = vpop.f32.mrb[0].mxu0
        %1270 = vdwg.mxu0
        %v1271 = vsel %vm667, %v1265, -inf
        %1272 = vmax.xlane.f32.xlu0 %v1271
        %v1273 = vpop.xlane.xlu0 %1272
        %v1274 = vsel %vm667, %v1268, -inf
        %1275 = vmax.xlane.f32.xlu0 %v1274
        %v1276 = vpop.xlane.xlu0 %1275
        %v1277 = vsub.f32 %v1265, %v1273
        %v1278 = vsub.f32 %v1268, %v1276
        %v1279 = vmul.f32 %v1277, 1.442695
        %v1280 = vpow.pop %v1279
        %v1281 = vmul.f32 %v1278, 1.442695
        %v1282 = vpow.pop %v1281
        %v1283 = vsel %vm667, %v1280, 0.0
        %1284 = vadd.xlane.f32.xlu0 %v1283
        %v1285 = vpop.xlane.xlu0 %1284
        %v1286 = vsel %vm667, %v1282, 0.0
        %1287 = vadd.xlane.f32.xlu0 %v1286
        %v1288 = vpop.xlane.xlu0 %1287
        %v1289 = vrcp.pop %v1285
        %v1290 = vrcp.pop %v1288
        %v1291 = vmul.f32 %v1280, %v1289
        %v1292 = vmul.f32 %v1282, %v1290
        %v1293 = vpack.c.bf16 %v1292, %v1291
        %1294 = vrot.lane.b32.xlu0 %v615, 88
        %v1295 = vpop.permute.xlu0 %1294
        %v1298 = vsel %vm667, %v1293, 0
        %1300 = vmatprep.subr.bf16.mxu0 0
        %1301 = vmatpush1.bf16.msra.mxu0 %v1295
        %1302 = vmatprep.subr.bf16.mxu0 0
        %1303 = vmatpush1.bf16.msra.mxu0 0
        %1304 = vmatprep.subr.bf16.mxu0 0
        %1305 = vmatpush1.bf16.msra.mxu0 0
        %1306 = vmatprep.subr.bf16.mxu0 0
        %1307 = vmatpush1.bf16.msra.mxu0 0
        %1308 = vmatprep.subr.bf16.mxu0 0
        %1309 = vmatpush1.bf16.msra.mxu0 0
        %1310 = vmatprep.subr.bf16.mxu0 0
        %1311 = vmatpush1.bf16.msra.mxu0 0
        %1312 = vmatprep.subr.bf16.mxu0 0
        %1313 = vmatpush1.bf16.msra.mxu0 0
        %1314 = vmatprep.subr.bf16.mxu0 0
        %1315 = vmatpush1.bf16.msra.mxu0 0
        %1316 = vmatprep.subr.bf16.mxu0 0
        %1317 = vmatpush1.bf16.msra.mxu0 0
        %1318 = vmatprep.subr.bf16.mxu0 0
        %1319 = vmatpush1.bf16.msra.mxu0 0
        %1320 = vmatprep.subr.bf16.mxu0 0
        %1321 = vmatpush1.bf16.msra.mxu0 0
        %1322 = vmatprep.subr.bf16.mxu0 0
        %1323 = vmatpush1.bf16.msra.mxu0 0
        %1324 = vmatprep.subr.bf16.mxu0 0
        %1325 = vmatpush1.bf16.msra.mxu0 0
        %1326 = vmatprep.subr.bf16.mxu0 0
        %1327 = vmatpush1.bf16.msra.mxu0 0
        %1328 = vmatprep.subr.bf16.mxu0 0
        %1329 = vmatpush1.bf16.msra.mxu0 0
        %1330 = vmatprep.subr.bf16.mxu0 0
        %1331 = vmatpush1.bf16.msra.mxu0 0
        %1332 = vmatprep.mubr.bf16.mxu0 0
        %1333 = vmatmul.mubr.bf16.gmra.mrb[0].mxu0 %v1298
        %v1334 = vpop.f32.mrb[0].mxu0
        %v1335 = vadd.f32 0.0, %v1334
        %v1336 = vpop.f32.mrb[0].mxu0
        %v1337 = vpop.f32.mrb[0].mxu0
        %v1338 = vadd.f32 0.0, %v1337
        %v1339 = vpop.f32.mrb[0].mxu0
        %1340 = vdwg.mxu0
        %1341 = vrot.lane.b32.xlu0 %v614, 80
        %v1342 = vpop.permute.xlu0 %1341
        %1343 = vrot.lane.b32.xlu0 %v614, 16
        %v1344 = vpop.permute.xlu0 %1343
        %v1346 = vsel %vm619, %v1342, 0
        %v1349 = vsel %vm619, %v1344, 0
        %1351 = vmatprep.subr.bf16.mxu0 0
        %1352 = vmatpush1.bf16.xpose.msra.mxu0 %v1349
        %1353 = vmatprep.subr.bf16.mxu0 0
        %1354 = vmatpush1.bf16.xpose.msra.mxu0 0
        %1355 = vmatprep.subr.bf16.mxu0 0
        %1356 = vmatpush1.bf16.xpose.msra.mxu0 0
        %1357 = vmatprep.subr.bf16.mxu0 0
        %1358 = vmatpush1.bf16.xpose.msra.mxu0 0
        %1359 = vmatprep.subr.bf16.mxu0 0
        %1360 = vmatpush1.bf16.xpose.msra.mxu0 0
        %1361 = vmatprep.subr.bf16.mxu0 0
        %1362 = vmatpush1.bf16.xpose.msra.mxu0 0
        %1363 = vmatprep.subr.bf16.mxu0 0
        %1364 = vmatpush1.bf16.xpose.msra.mxu0 0
        %1365 = vmatprep.subr.bf16.mxu0 0
        %1366 = vmatpush1.bf16.xpose.msra.mxu0 0
        %1367 = vmatprep.subr.bf16.mxu0 0
        %1368 = vmatpush1.bf16.xpose.msra.mxu0 0
        %1369 = vmatprep.subr.bf16.mxu0 0
        %1370 = vmatpush1.bf16.xpose.msra.mxu0 0
        %1371 = vmatprep.subr.bf16.mxu0 0
        %1372 = vmatpush1.bf16.xpose.msra.mxu0 0
        %1373 = vmatprep.subr.bf16.mxu0 0
        %1374 = vmatpush1.bf16.xpose.msra.mxu0 0
        %1375 = vmatprep.subr.bf16.mxu0 0
        %1376 = vmatpush1.bf16.xpose.msra.mxu0 0
        %1377 = vmatprep.subr.bf16.mxu0 0
        %1378 = vmatpush1.bf16.xpose.msra.mxu0 0
        %1379 = vmatprep.subr.bf16.mxu0 0
        %1380 = vmatpush1.bf16.xpose.msra.mxu0 0
        %1381 = vmatprep.subr.bf16.mxu0 0
        %1382 = vmatpush1.bf16.xpose.msra.mxu0 0
        %1383 = vmatprep.mubr.bf16.mxu0 0
        %1384 = vmatmul.mubr.bf16.gmra.mrb[0].mxu0 %v1346
        %v1385 = vpop.f32.mrb[0].mxu0
        %v1386 = vadd.f32 %v613, %v1385
        %v1387 = vpop.f32.mrb[0].mxu0
        %v1388 = vpop.f32.mrb[0].mxu0
        %v1389 = vadd.f32 %v613, %v1388
        %v1390 = vpop.f32.mrb[0].mxu0
        %1391 = vdwg.mxu0
        %v1392 = vsel %vm667, %v1386, -inf
        %1393 = vmax.xlane.f32.xlu0 %v1392
        %v1394 = vpop.xlane.xlu0 %1393
        %v1395 = vsel %vm667, %v1389, -inf
        %1396 = vmax.xlane.f32.xlu0 %v1395
        %v1397 = vpop.xlane.xlu0 %1396
        %v1398 = vsub.f32 %v1386, %v1394
        %v1399 = vsub.f32 %v1389, %v1397
        %v1400 = vmul.f32 %v1398, 1.442695
        %v1401 = vpow.pop %v1400
        %v1402 = vmul.f32 %v1399, 1.442695
        %v1403 = vpow.pop %v1402
        %v1404 = vsel %vm667, %v1401, 0.0
        %1405 = vadd.xlane.f32.xlu0 %v1404
        %v1406 = vpop.xlane.xlu0 %1405
        %v1407 = vsel %vm667, %v1403, 0.0
        %1408 = vadd.xlane.f32.xlu0 %v1407
        %v1409 = vpop.xlane.xlu0 %1408
        %v1410 = vrcp.pop %v1406
        %v1411 = vrcp.pop %v1409
        %v1412 = vmul.f32 %v1401, %v1410
        %v1413 = vmul.f32 %v1403, %v1411
        %v1414 = vpack.c.bf16 %v1413, %v1412
        %1415 = vrot.lane.b32.xlu0 %v615, 80
        %v1416 = vpop.permute.xlu0 %1415
        %v1419 = vsel %vm667, %v1414, 0
        %1421 = vmatprep.subr.bf16.mxu0 0
        %1422 = vmatpush1.bf16.msra.mxu0 %v1416
        %1423 = vmatprep.subr.bf16.mxu0 0
        %1424 = vmatpush1.bf16.msra.mxu0 0
        %1425 = vmatprep.subr.bf16.mxu0 0
        %1426 = vmatpush1.bf16.msra.mxu0 0
        %1427 = vmatprep.subr.bf16.mxu0 0
        %1428 = vmatpush1.bf16.msra.mxu0 0
        %1429 = vmatprep.subr.bf16.mxu0 0
        %1430 = vmatpush1.bf16.msra.mxu0 0
        %1431 = vmatprep.subr.bf16.mxu0 0
        %1432 = vmatpush1.bf16.msra.mxu0 0
        %1433 = vmatprep.subr.bf16.mxu0 0
        %1434 = vmatpush1.bf16.msra.mxu0 0
        %1435 = vmatprep.subr.bf16.mxu0 0
        %1436 = vmatpush1.bf16.msra.mxu0 0
        %1437 = vmatprep.subr.bf16.mxu0 0
        %1438 = vmatpush1.bf16.msra.mxu0 0
        %1439 = vmatprep.subr.bf16.mxu0 0
        %1440 = vmatpush1.bf16.msra.mxu0 0
        %1441 = vmatprep.subr.bf16.mxu0 0
        %1442 = vmatpush1.bf16.msra.mxu0 0
        %1443 = vmatprep.subr.bf16.mxu0 0
        %1444 = vmatpush1.bf16.msra.mxu0 0
        %1445 = vmatprep.subr.bf16.mxu0 0
        %1446 = vmatpush1.bf16.msra.mxu0 0
        %1447 = vmatprep.subr.bf16.mxu0 0
        %1448 = vmatpush1.bf16.msra.mxu0 0
        %1449 = vmatprep.subr.bf16.mxu0 0
        %1450 = vmatpush1.bf16.msra.mxu0 0
        %1451 = vmatprep.subr.bf16.mxu0 0
        %1452 = vmatpush1.bf16.msra.mxu0 0
        %1453 = vmatprep.mubr.bf16.mxu0 0
        %1454 = vmatmul.mubr.bf16.gmra.mrb[0].mxu0 %v1419
        %v1455 = vpop.f32.mrb[0].mxu0
        %v1456 = vadd.f32 0.0, %v1455
        %v1457 = vpop.f32.mrb[0].mxu0
        %v1458 = vpop.f32.mrb[0].mxu0
        %v1459 = vadd.f32 0.0, %v1458
        %v1460 = vpop.f32.mrb[0].mxu0
        %1461 = vdwg.mxu0
        %1462 = vrot.lane.b32.xlu0 %v614, 72
        %v1463 = vpop.permute.xlu0 %1462
        %1464 = vrot.lane.b32.xlu0 %v614, 8
        %v1465 = vpop.permute.xlu0 %1464
        %v1467 = vsel %vm619, %v1463, 0
        %v1470 = vsel %vm619, %v1465, 0
        %1472 = vmatprep.subr.bf16.mxu0 0
        %1473 = vmatpush1.bf16.xpose.msra.mxu0 %v1470
        %1474 = vmatprep.subr.bf16.mxu0 0
        %1475 = vmatpush1.bf16.xpose.msra.mxu0 0
        %1476 = vmatprep.subr.bf16.mxu0 0
        %1477 = vmatpush1.bf16.xpose.msra.mxu0 0
        %1478 = vmatprep.subr.bf16.mxu0 0
        %1479 = vmatpush1.bf16.xpose.msra.mxu0 0
        %1480 = vmatprep.subr.bf16.mxu0 0
        %1481 = vmatpush1.bf16.xpose.msra.mxu0 0
        %1482 = vmatprep.subr.bf16.mxu0 0
        %1483 = vmatpush1.bf16.xpose.msra.mxu0 0
        %1484 = vmatprep.subr.bf16.mxu0 0
        %1485 = vmatpush1.bf16.xpose.msra.mxu0 0
        %1486 = vmatprep.subr.bf16.mxu0 0
        %1487 = vmatpush1.bf16.xpose.msra.mxu0 0
        %1488 = vmatprep.subr.bf16.mxu0 0
        %1489 = vmatpush1.bf16.xpose.msra.mxu0 0
        %1490 = vmatprep.subr.bf16.mxu0 0
        %1491 = vmatpush1.bf16.xpose.msra.mxu0 0
        %1492 = vmatprep.subr.bf16.mxu0 0
        %1493 = vmatpush1.bf16.xpose.msra.mxu0 0
        %1494 = vmatprep.subr.bf16.mxu0 0
        %1495 = vmatpush1.bf16.xpose.msra.mxu0 0
        %1496 = vmatprep.subr.bf16.mxu0 0
        %1497 = vmatpush1.bf16.xpose.msra.mxu0 0
        %1498 = vmatprep.subr.bf16.mxu0 0
        %1499 = vmatpush1.bf16.xpose.msra.mxu0 0
        %1500 = vmatprep.subr.bf16.mxu0 0
        %1501 = vmatpush1.bf16.xpose.msra.mxu0 0
        %1502 = vmatprep.subr.bf16.mxu0 0
        %1503 = vmatpush1.bf16.xpose.msra.mxu0 0
        %1504 = vmatprep.mubr.bf16.mxu0 0
        %1505 = vmatmul.mubr.bf16.gmra.mrb[0].mxu0 %v1467
        %v1506 = vpop.f32.mrb[0].mxu0
        %v1507 = vadd.f32 %v613, %v1506
        %v1508 = vpop.f32.mrb[0].mxu0
        %v1509 = vpop.f32.mrb[0].mxu0
        %v1510 = vadd.f32 %v613, %v1509
        %v1511 = vpop.f32.mrb[0].mxu0
        %1512 = vdwg.mxu0
        %v1513 = vsel %vm667, %v1507, -inf
        %1514 = vmax.xlane.f32.xlu0 %v1513
        %v1515 = vpop.xlane.xlu0 %1514
        %v1516 = vsel %vm667, %v1510, -inf
        %1517 = vmax.xlane.f32.xlu0 %v1516
        %v1518 = vpop.xlane.xlu0 %1517
        %v1519 = vsub.f32 %v1507, %v1515
        %v1520 = vsub.f32 %v1510, %v1518
        %v1521 = vmul.f32 %v1519, 1.442695
        %v1522 = vpow.pop %v1521
        %v1523 = vmul.f32 %v1520, 1.442695
        %v1524 = vpow.pop %v1523
        %v1525 = vsel %vm667, %v1522, 0.0
        %1526 = vadd.xlane.f32.xlu0 %v1525
        %v1527 = vpop.xlane.xlu0 %1526
        %v1528 = vsel %vm667, %v1524, 0.0
        %1529 = vadd.xlane.f32.xlu0 %v1528
        %v1530 = vpop.xlane.xlu0 %1529
        %v1531 = vrcp.pop %v1527
        %v1532 = vrcp.pop %v1530
        %v1533 = vmul.f32 %v1522, %v1531
        %v1534 = vmul.f32 %v1524, %v1532
        %v1535 = vpack.c.bf16 %v1534, %v1533
        %1536 = vrot.lane.b32.xlu0 %v615, 72
        %v1537 = vpop.permute.xlu0 %1536
        %v1540 = vsel %vm667, %v1535, 0
        %1542 = vmatprep.subr.bf16.mxu0 0
        %1543 = vmatpush1.bf16.msra.mxu0 %v1537
        %1544 = vmatprep.subr.bf16.mxu0 0
        %1545 = vmatpush1.bf16.msra.mxu0 0
        %1546 = vmatprep.subr.bf16.mxu0 0
        %1547 = vmatpush1.bf16.msra.mxu0 0
        %1548 = vmatprep.subr.bf16.mxu0 0
        %1549 = vmatpush1.bf16.msra.mxu0 0
        %1550 = vmatprep.subr.bf16.mxu0 0
        %1551 = vmatpush1.bf16.msra.mxu0 0
        %1552 = vmatprep.subr.bf16.mxu0 0
        %1553 = vmatpush1.bf16.msra.mxu0 0
        %1554 = vmatprep.subr.bf16.mxu0 0
        %1555 = vmatpush1.bf16.msra.mxu0 0
        %1556 = vmatprep.subr.bf16.mxu0 0
        %1557 = vmatpush1.bf16.msra.mxu0 0
        %1558 = vmatprep.subr.bf16.mxu0 0
        %1559 = vmatpush1.bf16.msra.mxu0 0
        %1560 = vmatprep.subr.bf16.mxu0 0
        %1561 = vmatpush1.bf16.msra.mxu0 0
        %1562 = vmatprep.subr.bf16.mxu0 0
        %1563 = vmatpush1.bf16.msra.mxu0 0
        %1564 = vmatprep.subr.bf16.mxu0 0
        %1565 = vmatpush1.bf16.msra.mxu0 0
        %1566 = vmatprep.subr.bf16.mxu0 0
        %1567 = vmatpush1.bf16.msra.mxu0 0
        %1568 = vmatprep.subr.bf16.mxu0 0
        %1569 = vmatpush1.bf16.msra.mxu0 0
        %1570 = vmatprep.subr.bf16.mxu0 0
        %1571 = vmatpush1.bf16.msra.mxu0 0
        %1572 = vmatprep.subr.bf16.mxu0 0
        %1573 = vmatpush1.bf16.msra.mxu0 0
        %1574 = vmatprep.mubr.bf16.mxu0 0
        %1575 = vmatmul.mubr.bf16.gmra.mrb[0].mxu0 %v1540
        %v1576 = vpop.f32.mrb[0].mxu0
        %v1577 = vadd.f32 0.0, %v1576
        %v1578 = vpop.f32.mrb[0].mxu0
        %v1579 = vpop.f32.mrb[0].mxu0
        %v1580 = vadd.f32 0.0, %v1579
        %v1581 = vpop.f32.mrb[0].mxu0
        %1582 = vdwg.mxu0
        %1585 = vrot.lane.b32.xlu0 %v851, 8
        %v1586 = vpop.permute.xlu0 %1585
        %1587 = vrot.lane.b32.xlu0 %v854, 8
        %v1588 = vpop.permute.xlu0 %1587
        %1593 = vrot.lane.b32.xlu0 %v972, 16
        %v1594 = vpop.permute.xlu0 %1593
        %1595 = vrot.lane.b32.xlu0 %v975, 16
        %v1596 = vpop.permute.xlu0 %1595
        %1601 = vrot.lane.b32.xlu0 %v1093, 24
        %v1602 = vpop.permute.xlu0 %1601
        %1603 = vrot.lane.b32.xlu0 %v1096, 24
        %v1604 = vpop.permute.xlu0 %1603
        %1609 = vrot.lane.b32.xlu0 %v1214, 32
        %v1610 = vpop.permute.xlu0 %1609
        %1611 = vrot.lane.b32.xlu0 %v1217, 32
        %v1612 = vpop.permute.xlu0 %1611
        %1617 = vrot.lane.b32.xlu0 %v1335, 40
        %v1618 = vpop.permute.xlu0 %1617
        %1619 = vrot.lane.b32.xlu0 %v1338, 40
        %v1620 = vpop.permute.xlu0 %1619
        %1625 = vrot.lane.b32.xlu0 %v1456, 48
        %v1626 = vpop.permute.xlu0 %1625
        %1627 = vrot.lane.b32.xlu0 %v1459, 48
        %v1628 = vpop.permute.xlu0 %1627
        %1633 = vrot.lane.b32.xlu0 %v1577, 56
        %v1634 = vpop.permute.xlu0 %1633
        %1635 = vrot.lane.b32.xlu0 %v1580, 56
        %v1636 = vpop.permute.xlu0 %1635
        %v1639 = vsel %vm619, %v729, %v1586
        %v1640 = vsel %vm619, %v732, %v1588
        %v1641 = vsel %vm667, %v1639, %v1594
        %v1642 = vsel %vm667, %v1640, %v1596
        %vm1643 = vcmask 195584
        %v1644 = vsel %vm1643, %v1641, %v1602
        %v1645 = vsel %vm1643, %v1642, %v1604
        %vm1646 = vcmask 261120
        %v1647 = vsel %vm1646, %v1644, %v1610
        %v1648 = vsel %vm1646, %v1645, %v1612
        %vm1649 = vcmask 326656
        %v1650 = vsel %vm1649, %v1647, %v1618
        %v1651 = vsel %vm1649, %v1648, %v1620
        %vm1652 = vcmask 392192
        %v1653 = vsel %vm1652, %v1650, %v1626
        %v1654 = vsel %vm1652, %v1651, %v1628
        %vm1655 = vcmask 457728
        %v1656 = vsel %vm1655, %v1653, %v1634
        %v1657 = vsel %vm1655, %v1654, %v1636
        %v1658 = vpack.c.bf16 %v1657, %v1656
        %v1659 = vlaneseq
        %v1660 = vshrl.u32 %v1659, 7
        %v1661 = vsub.s32 1, %v1660
        %v1662 = vrot.slane %v512, %v1661
        %v1671 = vunpack.c.l.b16 %v488
        %v1672 = vunpack.c.l.b16 %v489
        %v1673 = vunpack.c.l.b16 %v490
        %v1674 = vunpack.c.l.b16 %v491
        %v1675 = vunpack.c.l.b16 %v492
        %v1676 = vunpack.c.l.b16 %v493
        %v1677 = vunpack.c.l.b16 %v494
        %v1678 = vunpack.c.l.b16 %v495
        %v1679 = vpack.c.b16 %v1672, %v1671
        %v1680 = vpack.c.b16 %v1674, %v1673
        %v1681 = vpack.c.b16 %v1676, %v1675
        %v1682 = vpack.c.b16 %v1678, %v1677
        %v1688 = vsel %vm563, %v1658, 0
        %1690 = vmatprep.subr.bf16.mxu0 0
        %1691 = vmatpush1.bf16.msra.mxu0 %v1679
        %1692 = vmatprep.subr.bf16.mxu0 0
        %1693 = vmatpush1.bf16.msra.mxu0 %v1680
        %1694 = vmatprep.subr.bf16.mxu0 0
        %1695 = vmatpush1.bf16.msra.mxu0 %v1681
        %1696 = vmatprep.subr.bf16.mxu0 0
        %1697 = vmatpush1.bf16.msra.mxu0 %v1682
        %1698 = vmatprep.subr.bf16.mxu0 0
        %1699 = vmatpush1.bf16.msra.mxu0 0
        %1700 = vmatprep.subr.bf16.mxu0 0
        %1701 = vmatpush1.bf16.msra.mxu0 0
        %1702 = vmatprep.subr.bf16.mxu0 0
        %1703 = vmatpush1.bf16.msra.mxu0 0
        %1704 = vmatprep.subr.bf16.mxu0 0
        %1705 = vmatpush1.bf16.msra.mxu0 0
        %1706 = vmatprep.subr.bf16.mxu0 0
        %1707 = vmatpush1.bf16.msra.mxu0 0
        %1708 = vmatprep.subr.bf16.mxu0 0
        %1709 = vmatpush1.bf16.msra.mxu0 0
        %1710 = vmatprep.subr.bf16.mxu0 0
        %1711 = vmatpush1.bf16.msra.mxu0 0
        %1712 = vmatprep.subr.bf16.mxu0 0
        %1713 = vmatpush1.bf16.msra.mxu0 0
        %1714 = vmatprep.subr.bf16.mxu0 0
        %1715 = vmatpush1.bf16.msra.mxu0 0
        %1716 = vmatprep.subr.bf16.mxu0 0
        %1717 = vmatpush1.bf16.msra.mxu0 0
        %1718 = vmatprep.subr.bf16.mxu0 0
        %1719 = vmatpush1.bf16.msra.mxu0 0
        %1720 = vmatprep.subr.bf16.mxu0 0
        %1721 = vmatpush1.bf16.msra.mxu0 0
        %1722 = vmatprep.mubr.bf16.mxu0 0
        %1723 = vmatmul.mubr.bf16.gmra.mrb[0].mxu0 %v1688
        %v1724 = vpop.f32.mrb[0].mxu0
        %v1725 = vadd.f32 %v1662, %v1724
        %v1726 = vpop.f32.mrb[0].mxu0
        %v1727 = vpop.f32.mrb[0].mxu0
        %v1728 = vadd.f32 %v1662, %v1727
        %v1729 = vpop.f32.mrb[0].mxu0
        %1730 = vdwg.mxu0
        %v1731 = vadd.f32 %v478, %v1725
        %v1732 = vadd.f32 %v479, %v1728
        %v1733 = vsel %vm563, %v1731, 0.0
        %1734 = vadd.xlane.f32.xlu0 %v1733
        %v1735 = vpop.xlane.xlu0 %1734
        %v1736 = vsel %vm563, %v1732, 0.0
        %1737 = vadd.xlane.f32.xlu0 %v1736
        %v1738 = vpop.xlane.xlu0 %1737
        %v1739 = vrcp.pop 64.0
        %v1740 = vmul.f32 %v1735, %v1739
        %v1741 = vmul.f32 %v1738, %v1739
        %v1742 = vsub.f32 %v1731, %v1740
        %v1743 = vsub.f32 %v1732, %v1741
        %v1744 = vmul.f32 %v1742, %v1742
        %v1745 = vmul.f32 %v1743, %v1743
        %v1746 = vsel %vm563, %v1744, 0.0
        %1747 = vadd.xlane.f32.xlu0 %v1746
        %v1748 = vpop.xlane.xlu0 %1747
        %v1749 = vsel %vm563, %v1745, 0.0
        %1750 = vadd.xlane.f32.xlu0 %v1749
        %v1751 = vpop.xlane.xlu0 %1750
        %v1752 = vmul.f32 %v1748, %v1739
        %v1753 = vmul.f32 %v1751, %v1739
        %v1754 = vadd.f32 %v1752, 1e-05
        %v1755 = vadd.f32 %v1753, 1e-05
        %v1756 = vrsqrt.pop %v1754
        %v1757 = vrsqrt.pop %v1755
        %v1758 = vmul.f32 %v1742, %v1756
        %v1759 = vmul.f32 %v1743, %v1757
        %v1760 = vlaneseq
        %v1761 = vshrl.u32 %v1760, 7
        %v1762 = vsub.s32 4, %v1761
        %v1763 = vrot.slane %v512, %v1762
        %v1764 = vmul.f32 %v1758, %v1763
        %v1765 = vmul.f32 %v1759, %v1763
        %v1766 = vlaneseq
        %v1767 = vshrl.u32 %v1766, 7
        %v1768 = vsub.s32 5, %v1767
        %v1769 = vrot.slane %v512, %v1768
        %v1770 = vadd.f32 %v1764, %v1769
        %v1771 = vadd.f32 %v1765, %v1769
        %v1772 = vpack.c.bf16 %v1771, %v1770
        %v1773 = vlaneseq
        %v1774 = vshrl.u32 %v1773, 7
        %v1775 = vsub.s32 2, %v1774
        %v1776 = vrot.slane %v512, %v1775
        %v1785 = vunpack.c.l.b16 %v496
        %v1786 = vunpack.c.l.b16 %v497
        %v1787 = vunpack.c.l.b16 %v498
        %v1788 = vunpack.c.l.b16 %v499
        %v1789 = vunpack.c.l.b16 %v500
        %v1790 = vunpack.c.l.b16 %v501
        %v1791 = vunpack.c.l.b16 %v502
        %v1792 = vunpack.c.l.b16 %v503
        %v1793 = vpack.c.b16 %v1786, %v1785
        %v1794 = vpack.c.b16 %v1788, %v1787
        %v1795 = vpack.c.b16 %v1790, %v1789
        %v1796 = vpack.c.b16 %v1792, %v1791
        %v1802 = vsel %vm563, %v1772, 0
        %1804 = vmatprep.subr.bf16.mxu0 0
        %1805 = vmatpush1.bf16.msra.mxu0 %v1793
        %1806 = vmatprep.subr.bf16.mxu0 0
        %1807 = vmatpush1.bf16.msra.mxu0 %v1794
        %1808 = vmatprep.subr.bf16.mxu0 0
        %1809 = vmatpush1.bf16.msra.mxu0 %v1795
        %1810 = vmatprep.subr.bf16.mxu0 0
        %1811 = vmatpush1.bf16.msra.mxu0 %v1796
        %1812 = vmatprep.subr.bf16.mxu0 0
        %1813 = vmatpush1.bf16.msra.mxu0 0
        %1814 = vmatprep.subr.bf16.mxu0 0
        %1815 = vmatpush1.bf16.msra.mxu0 0
        %1816 = vmatprep.subr.bf16.mxu0 0
        %1817 = vmatpush1.bf16.msra.mxu0 0
        %1818 = vmatprep.subr.bf16.mxu0 0
        %1819 = vmatpush1.bf16.msra.mxu0 0
        %1820 = vmatprep.subr.bf16.mxu0 0
        %1821 = vmatpush1.bf16.msra.mxu0 0
        %1822 = vmatprep.subr.bf16.mxu0 0
        %1823 = vmatpush1.bf16.msra.mxu0 0
        %1824 = vmatprep.subr.bf16.mxu0 0
        %1825 = vmatpush1.bf16.msra.mxu0 0
        %1826 = vmatprep.subr.bf16.mxu0 0
        %1827 = vmatpush1.bf16.msra.mxu0 0
        %1828 = vmatprep.subr.bf16.mxu0 0
        %1829 = vmatpush1.bf16.msra.mxu0 0
        %1830 = vmatprep.subr.bf16.mxu0 0
        %1831 = vmatpush1.bf16.msra.mxu0 0
        %1832 = vmatprep.subr.bf16.mxu0 0
        %1833 = vmatpush1.bf16.msra.mxu0 0
        %1834 = vmatprep.subr.bf16.mxu0 0
        %1835 = vmatpush1.bf16.msra.mxu0 0
        %1836 = vmatprep.mubr.bf16.mxu0 0
        %1837 = vmatmul.mubr.bf16.gmra.mrb[0].mxu0 %v1802
        %v1838 = vpop.f32.mrb[0].mxu0
        %v1839 = vadd.f32 %v1776, %v1838
        %v1840 = vpop.f32.mrb[0].mxu0
        %v1841 = vpop.f32.mrb[0].mxu0
        %v1842 = vadd.f32 %v1776, %v1841
        %v1843 = vpop.f32.mrb[0].mxu0
        %1844 = vdwg.mxu0
        %v1845 = vmax.f32 %v1839, 0.0
        %v1846 = vmax.f32 %v1842, 0.0
        %v1847 = vpack.c.bf16 %v1846, %v1845
        %v1848 = vlaneseq
        %v1849 = vshrl.u32 %v1848, 7
        %v1850 = vsub.s32 3, %v1849
        %v1851 = vrot.slane %v512, %v1850
        %v1860 = vunpack.c.l.b16 %v504
        %v1861 = vunpack.c.l.b16 %v505
        %v1862 = vunpack.c.l.b16 %v506
        %v1863 = vunpack.c.l.b16 %v507
        %v1864 = vunpack.c.l.b16 %v508
        %v1865 = vunpack.c.l.b16 %v509
        %v1866 = vunpack.c.l.b16 %v510
        %v1867 = vunpack.c.l.b16 %v511
        %v1868 = vpack.c.b16 %v1861, %v1860
        %v1869 = vpack.c.b16 %v1863, %v1862
        %v1870 = vpack.c.b16 %v1865, %v1864
        %v1871 = vpack.c.b16 %v1867, %v1866
        %v1877 = vsel %vm563, %v1847, 0
        %1879 = vmatprep.subr.bf16.mxu0 0
        %1880 = vmatpush1.bf16.msra.mxu0 %v1868
        %1881 = vmatprep.subr.bf16.mxu0 0
        %1882 = vmatpush1.bf16.msra.mxu0 %v1869
        %1883 = vmatprep.subr.bf16.mxu0 0
        %1884 = vmatpush1.bf16.msra.mxu0 %v1870
        %1885 = vmatprep.subr.bf16.mxu0 0
        %1886 = vmatpush1.bf16.msra.mxu0 %v1871
        %1887 = vmatprep.subr.bf16.mxu0 0
        %1888 = vmatpush1.bf16.msra.mxu0 0
        %1889 = vmatprep.subr.bf16.mxu0 0
        %1890 = vmatpush1.bf16.msra.mxu0 0
        %1891 = vmatprep.subr.bf16.mxu0 0
        %1892 = vmatpush1.bf16.msra.mxu0 0
        %1893 = vmatprep.subr.bf16.mxu0 0
        %1894 = vmatpush1.bf16.msra.mxu0 0
        %1895 = vmatprep.subr.bf16.mxu0 0
        %1896 = vmatpush1.bf16.msra.mxu0 0
        %1897 = vmatprep.subr.bf16.mxu0 0
        %1898 = vmatpush1.bf16.msra.mxu0 0
        %1899 = vmatprep.subr.bf16.mxu0 0
        %1900 = vmatpush1.bf16.msra.mxu0 0
        %1901 = vmatprep.subr.bf16.mxu0 0
        %1902 = vmatpush1.bf16.msra.mxu0 0
        %1903 = vmatprep.subr.bf16.mxu0 0
        %1904 = vmatpush1.bf16.msra.mxu0 0
        %1905 = vmatprep.subr.bf16.mxu0 0
        %1906 = vmatpush1.bf16.msra.mxu0 0
        %1907 = vmatprep.subr.bf16.mxu0 0
        %1908 = vmatpush1.bf16.msra.mxu0 0
        %1909 = vmatprep.subr.bf16.mxu0 0
        %1910 = vmatpush1.bf16.msra.mxu0 0
        %1911 = vmatprep.mubr.bf16.mxu0 0
        %1912 = vmatmul.mubr.bf16.gmra.mrb[0].mxu0 %v1877
        %v1913 = vpop.f32.mrb[0].mxu0
        %v1914 = vadd.f32 %v1851, %v1913
        %v1915 = vpop.f32.mrb[0].mxu0
        %v1916 = vpop.f32.mrb[0].mxu0
        %v1917 = vadd.f32 %v1851, %v1916
        %v1918 = vpop.f32.mrb[0].mxu0
        %1919 = vdwg.mxu0
        %v1920 = vadd.f32 %v1770, %v1914
        %v1921 = vadd.f32 %v1771, %v1917
        %v1922 = vsel %vm563, %v1920, 0.0
        %1923 = vadd.xlane.f32.xlu0 %v1922
        %v1924 = vpop.xlane.xlu0 %1923
        %v1925 = vsel %vm563, %v1921, 0.0
        %1926 = vadd.xlane.f32.xlu0 %v1925
        %v1927 = vpop.xlane.xlu0 %1926
        %v1928 = vmul.f32 %v1924, %v1739
        %v1929 = vmul.f32 %v1927, %v1739
        %v1930 = vsub.f32 %v1920, %v1928
        %v1931 = vsub.f32 %v1921, %v1929
        %v1932 = vmul.f32 %v1930, %v1930
        %v1933 = vmul.f32 %v1931, %v1931
        %v1934 = vsel %vm563, %v1932, 0.0
        %1935 = vadd.xlane.f32.xlu0 %v1934
        %v1936 = vpop.xlane.xlu0 %1935
        %v1937 = vsel %vm563, %v1933, 0.0
        %1938 = vadd.xlane.f32.xlu0 %v1937
        %v1939 = vpop.xlane.xlu0 %1938
        %v1940 = vmul.f32 %v1936, %v1739
        %v1941 = vmul.f32 %v1939, %v1739
        %v1942 = vadd.f32 %v1940, 1e-05
        %v1943 = vadd.f32 %v1941, 1e-05
        %v1944 = vrsqrt.pop %v1942
        %v1945 = vrsqrt.pop %v1943
        %v1946 = vmul.f32 %v1930, %v1944
        %v1947 = vmul.f32 %v1931, %v1945
        %v1948 = vlaneseq
        %v1949 = vshrl.u32 %v1948, 7
        %v1950 = vsub.s32 6, %v1949
        %v1951 = vrot.slane %v512, %v1950
        %v1952 = vmul.f32 %v1946, %v1951
        %v1953 = vmul.f32 %v1947, %v1951
        %v1954 = vlaneseq
        %v1955 = vshrl.u32 %v1954, 7
        %v1956 = vsub.s32 7, %v1955
        %v1957 = vrot.slane %v512, %v1956
        %v1958 = vadd.f32 %v1952, %v1957
        %v1959 = vadd.f32 %v1953, %v1957
        %1960 = vst.msk [vmem:[%s467] sm:$0xff] %vm563, %v1958
        %1961 = vst.msk [vmem:[%s467 + $0x8] sm:$0xff] %vm563, %v1959
        %p1962 = scmp.eq.s32.totalorder %s32, 2
        // Predicated region
        $region69: #{ft_transformer_convs.1} parent=47 // pred_check
          %p1963 = pneg %p1962
        $region70: #{ft_transformer_convs.1} parent=47 // pred_check_branch
          %1965 = sbr.rel (%p1963) target = $region72
        $region71: #{ft_transformer_convs.1} parent=47 // pred_region
          %v1966 = vld [vmem:[%s6] sm:$0x1]
          %v1967 = vld [vmem:[%s6 + $0x1] sm:$0x1]
          %v1968 = vsel %vm563, %v1958, 0.0
          %1969 = vadd.xlane.f32.xlu0 %v1968
          %v1970 = vpop.xlane.xlu0 %1969
          %v1971 = vsel %vm563, %v1959, 0.0
          %1972 = vadd.xlane.f32.xlu0 %v1971
          %v1973 = vpop.xlane.xlu0 %1972
          %v1974 = vmul.f32 %v1970, %v1739
          %v1975 = vmul.f32 %v1973, %v1739
          %v1976 = vsub.f32 %v1958, %v1974
          %v1977 = vsub.f32 %v1959, %v1975
          %v1978 = vmul.f32 %v1976, %v1976
          %v1979 = vmul.f32 %v1977, %v1977
          %v1980 = vsel %vm563, %v1978, 0.0
          %1981 = vadd.xlane.f32.xlu0 %v1980
          %v1982 = vpop.xlane.xlu0 %1981
          %v1983 = vsel %vm563, %v1979, 0.0
          %1984 = vadd.xlane.f32.xlu0 %v1983
          %v1985 = vpop.xlane.xlu0 %1984
          %v1986 = vmul.f32 %v1982, %v1739
          %v1987 = vmul.f32 %v1985, %v1739
          %v1988 = vadd.f32 %v1986, 1e-05
          %v1989 = vadd.f32 %v1987, 1e-05
          %v1990 = vrsqrt.pop %v1988
          %v1991 = vrsqrt.pop %v1989
          %v1992 = vmul.f32 %v1976, %v1990
          %v1993 = vmul.f32 %v1977, %v1991
          %v1994 = vlaneseq
          %v1995 = vshrl.u32 %v1994, 7
          %v1996 = vsub.s32 0, %v1995
          %v1997 = vrot.slane %v1966, %v1996
          %v1998 = vmul.f32 %v1992, %v1997
          %v1999 = vmul.f32 %v1993, %v1997
          %v2000 = vlaneseq
          %v2001 = vshrl.u32 %v2000, 7
          %v2002 = vsub.s32 0, %v2001
          %v2003 = vrot.slane %v1967, %v2002
          %v2004 = vadd.f32 %v1998, %v2003
          %v2005 = vadd.f32 %v1999, %v2003
          %2006 = vst.msk [vmem:[%s467] sm:$0xff] %vm563, %v2004
          %2007 = vst.msk [vmem:[%s467 + $0x8] sm:$0xff] %vm563, %v2005
        $region72: #{ft_transformer_convs.1} parent=47 // pred_fallthru
          _
        %p2008 = scmp.lt.s32.totalorder %s31, 1
        %s2009 = scalar_select %p2008, %s31, 1
        %s2010 = smul.addr %s2009, 2
        %s2011 = smul.addr %s2010, 8
        %s2012 = scalar_lea.vmem %s7, %s2011
        // Predicated region
        $region73: #{ft_transformer_convs.1} parent=47 // pred_check
          %p2013 = pneg %p234
        $region74: #{ft_transformer_convs.1} parent=47 // pred_check_branch
          %2015 = sbr.rel (%p2013) target = $region76
        $region75: #{ft_transformer_convs.1} parent=47 // pred_region
          _
        $region76: #{ft_transformer_convs.1} parent=47 // pred_fallthru
          _
      $region48: #{ft_transformer_convs.1} parent=5 // pred_fallthru
        _
      %p2016 = scmp.le.s32.totalorder 2, %s22
      // Predicated region
      $region77: #{ft_transformer_convs.1} parent=5 // pred_check
        %p2017 = pneg %p2016
      $region78: #{ft_transformer_convs.1} parent=5 // pred_check_branch
        %2019 = sbr.rel (%p2017) target = $region80
      $region79: #{ft_transformer_convs.1} parent=5 // pred_region
        %s2020 = ssub.s32 %s22, 2
        // Predicated region
        $region81: #{ft_transformer_convs.1} parent=79 // pred_check
          %p2021 = pneg %p240
        $region82: #{ft_transformer_convs.1} parent=79 // pred_check_branch
          %2023 = sbr.rel (%p2021) target = $region84
        $region83: #{ft_transformer_convs.1} parent=79 // pred_region
          %p2024 = scmp.lt.s32.totalorder %s33, 1
          %s2025 = scalar_select %p2024, %s33, 1
          %s2026 = smul.addr %s2025, 2
          %s2027 = smul.addr %s2026, 8
          %s2028 = scalar_lea.vmem %s7, %s2027
        $region84: #{ft_transformer_convs.1} parent=79 // pred_fallthru
          _
      $region80: #{ft_transformer_convs.1} parent=5 // pred_fallthru
        _
    $region6: #{ft_transformer_convs.1} parent=1 // loop_footer
      %s26 = sadd.s32 1, %s22
    $region7: #{ft_transformer_convs.1} parent=1 // loop_footer_branch
      %21 = sbr.rel target = $region3
    $region8: #{ft_transformer_convs.1} parent=1 // loop_exit
      _
    %2029 = vsyncpa [#allocation3], 1
    %s2030 = scalar_lea.sflag [#allocation3], 1
    %2031 = vsyncpa %s2030, 1
    %2032 = vsyncpa [#allocation5], 1
    %s2033 = scalar_lea.sflag [#allocation5], 1
    %2034 = vsyncpa %s2033, 1
    %2035 = vsyncpa [#allocation8], 1
    %s2036 = scalar_lea.sflag [#allocation8], 1
    %2037 = vsyncpa %s2036, 1

</llo_original>
